<compile_context>
chip_gen: v5e
topology: v5e:2x2
jax: 0.10.0
libtpu: 0.0.40
codegen_flags: <defaults>
</compile_context>

<pallas_src>
import numpy as np
import jax
import jax.numpy as jnp
from jax.experimental import pallas as pl
from jax.experimental.pallas import tpu as pltpu


def _pe_kernel(a_ref, b_ref, out_ref):
    # a_ref:   (C, 2, TW)   a_ref[:, 0, :] = sin(A), a_ref[:, 1, :] = cos(A)   (column table)
    # b_ref:   (C, TH, 2)   b_ref[:, :, 0] = sin(B), b_ref[:, :, 1] = cos(B)   (row table)
    # out_ref: (2C, TH, TW) channels 0..C-1 -> sin(phase), C..2C-1 -> cos(phase)
    c = a_ref.shape[0]

    sin_a = a_ref[:, 0:1, :]        # (C, 1, TW)  broadcast over rows (sublanes)
    cos_a = a_ref[:, 1:2, :]
    sin_b = b_ref[:, :, 0:1]        # (C, TH, 1)  broadcast over columns (lanes)
    cos_b = b_ref[:, :, 1:2]

    # Angle-addition: ~3 VPU ops per output element, no transcendentals.
    out_ref[:c] = sin_a * cos_b + cos_a * sin_b     # sin(A + B)
    out_ref[c:] = cos_a * cos_b - sin_a * sin_b     # cos(A + B)


# Per output block budget.  x2 (double buffering) plus the lane-padded side
# tables and compiler temporaries stays comfortably inside v5e's 16 MiB and
# v7x's 32 MiB default scoped VMEM.
_BLOCK_BUDGET_BYTES = 2 * 1024 * 1024


def _pick_tiles(h: int, w: int, two_c: int) -> tuple:
    """Choose (TH, TW) for the (2C, TH, TW) f32 output block.

    TW: full W (lane axis, contiguous writeback) unless even an 8-row slab
        exceeds the budget, in which case split W into multiples of 128.
    TH: multiple of 8 (sublane), sized for <= budget bytes per block and
        >= 4 grid steps along H when H allows it (pipelines the output DMA
        and feeds both v7x TensorCores).  Non-dividing tiles are fine: the
        grid uses cdiv and Pallas masks the partial boundary blocks.
    """
    itemsize = 4

    tw = w
    if w >= 256 and two_c * 8 * w * itemsize > _BLOCK_BUDGET_BYTES:
        tw = max(128, (_BLOCK_BUDGET_BYTES // (two_c * 8 * itemsize)) // 128 * 128)
        tw = min(tw, w)

    if h <= 8:
        th = h
    else:
        row_bytes = two_c * tw * itemsize
        budget_rows = max(8, (_BLOCK_BUDGET_BYTES // row_bytes) // 8 * 8)
        target_rows = max(8, (h // 4) // 8 * 8)     # aim for >= 4 row blocks
        th = min(budget_rows, target_rows)
    return th, tw


def position_embedding_random(gaussian_matrix: jax.Array, size: int) -> jax.Array:
    """Returns (2*num_pos_feats, size, size) float32, matching the PyTorch forward."""
    C = gaussian_matrix.shape[1]
    h = w = int(size)
    two_c = 2 * C

    g = gaussian_matrix.astype(jnp.float32)
    two_pi = 2.0 * np.pi

    # Normalized, centered coordinates with the 2*pi scale folded in (tiny 1-D arrays,
    # so no full-tile scale pass inside the kernel).
    xs = (2.0 * (jnp.arange(w, dtype=jnp.float32) + 0.5) / w - 1.0) * two_pi   # (W,)
    ys = (2.0 * (jnp.arange(h, dtype=jnp.float32) + 0.5) / h - 1.0) * two_pi   # (H,)

    pa = g[0][:, None] * xs[None, :]           # (C, W)  column phases  A[c, j]
    pb = g[1][:, None] * ys[None, :]           # (C, H)  row phases     B[c, i]

    # C*(H+W) transcendentals total (vs C*H*W if evaluated per pixel).
    a_tab = jnp.stack([jnp.sin(pa), jnp.cos(pa)], axis=1)    # (C, 2, W)
    b_tab = jnp.stack([jnp.sin(pb), jnp.cos(pb)], axis=2)    # (C, H, 2)

    th, tw = _pick_tiles(h, w, two_c)
    grid = (pl.cdiv(h, th), pl.cdiv(w, tw))

    out = pl.pallas_call(
        _pe_kernel,
        out_shape=jax.ShapeDtypeStruct((two_c, h, w), jnp.float32),
        grid=grid,
        in_specs=[
            pl.BlockSpec((C, 2, tw), lambda i, j: (0, 0, j)),     # column table (re-fetched only when j changes)
            pl.BlockSpec((C, th, 2), lambda i, j: (0, i, 0)),     # row table slice for this row block
        ],
        out_specs=pl.BlockSpec((two_c, th, tw), lambda i, j: (0, i, j)),
        compiler_params=pltpu.CompilerParams(
            dimension_semantics=("parallel", "parallel")),
    )(a_tab, b_tab)
    return out


def _reference(gaussian_matrix: np.ndarray, size: int) -> np.ndarray:
    h = w = size
    grid = np.ones((h, w), dtype=np.float32)
    y_embed = (grid.cumsum(axis=0) - 0.5) / h
    x_embed = (grid.cumsum(axis=1) - 0.5) / w
    coords = np.stack([x_embed, y_embed], axis=-1)            # (H, W, 2)
    coords = 2.0 * coords - 1.0
    coords = coords @ gaussian_matrix                         # (H, W, C)
    coords = 2.0 * np.pi * coords
    pe = np.concatenate([np.sin(coords), np.cos(coords)], axis=-1)
    return np.transpose(pe, (2, 0, 1)).astype(np.float32)


if __name__ == "__main__":
    num_pos_feats = 32
    scale = 1.0

    # Deterministic stand-in for the torch.randn buffer created in __init__.
    key = jax.random.PRNGKey(0)
    gaussian_matrix = scale * jax.random.normal(key, (2, num_pos_feats), dtype=jnp.float32)

    # 16: 2 row blocks; 48: 6 row blocks (exact division); 36: partial last block (masked path).
    for size in (16, 48, 36):
        out = jax.block_until_ready(position_embedding_random(gaussian_matrix, size))
        assert out.shape == (2 * num_pos_feats, size, size), out.shape
        ref = _reference(np.asarray(gaussian_matrix), size)
        np.testing.assert_allclose(np.asarray(out), ref, rtol=1e-5, atol=2e-5)

    print("KERNEL_OK")
</pallas_src>

<mosaic_0001>
module attributes {stable_mosaic.version = 11 : i64} {
  func.func @_pe_kernel(%arg0: i32, %arg1: i32, %arg2: memref<32x2x16xf32, #tpu.memory_space<vmem>>, %arg3: memref<32x8x2xf32, #tpu.memory_space<vmem>>, %arg4: memref<64x8x16xf32, #tpu.memory_space<vmem>>) attributes {dimension_semantics = [#tpu.dimension_semantics<parallel>, #tpu.dimension_semantics<parallel>], iteration_bounds = array<i64: 2, 1>, scalar_prefetch = 0 : i64, scratch_operands = 0 : i64, tpu.core_type = #tpu.core_type<tc>, window_params = [{transform_indices = @transform_0, window_bounds = array<i64: 32, 2, 16>}, {transform_indices = @transform_1, window_bounds = array<i64: 32, 8, 2>}, {transform_indices = @transform_2, window_bounds = array<i64: 64, 8, 16>}]} {
    %c0 = arith.constant 0 : index
    %c0_0 = arith.constant 0 : index
    %c0_1 = arith.constant 0 : index
    %0 = vector.load %arg2[%c0, %c0_0, %c0_1] : memref<32x2x16xf32, #tpu.memory_space<vmem>>, vector<32x1x16xf32>
    %c0_2 = arith.constant 0 : index
    %c1 = arith.constant 1 : index
    %c0_3 = arith.constant 0 : index
    %1 = vector.load %arg2[%c0_2, %c1, %c0_3] : memref<32x2x16xf32, #tpu.memory_space<vmem>>, vector<32x1x16xf32>
    %c0_4 = arith.constant 0 : index
    %c0_5 = arith.constant 0 : index
    %c0_6 = arith.constant 0 : index
    %2 = vector.load %arg3[%c0_4, %c0_5, %c0_6] : memref<32x8x2xf32, #tpu.memory_space<vmem>>, vector<32x8x1xf32>
    %c0_7 = arith.constant 0 : index
    %c0_8 = arith.constant 0 : index
    %c1_9 = arith.constant 1 : index
    %3 = vector.load %arg3[%c0_7, %c0_8, %c1_9] : memref<32x8x2xf32, #tpu.memory_space<vmem>>, vector<32x8x1xf32>
    %4 = vector.broadcast %0 : vector<32x1x16xf32> to vector<32x8x16xf32>
    %5 = vector.broadcast %3 : vector<32x8x1xf32> to vector<32x8x16xf32>
    %6 = arith.mulf %4, %5 : vector<32x8x16xf32>
    %7 = vector.broadcast %1 : vector<32x1x16xf32> to vector<32x8x16xf32>
    %8 = vector.broadcast %2 : vector<32x8x1xf32> to vector<32x8x16xf32>
    %9 = arith.mulf %7, %8 : vector<32x8x16xf32>
    %10 = arith.addf %6, %9 : vector<32x8x16xf32>
    %c0_10 = arith.constant 0 : index
    %c0_11 = arith.constant 0 : index
    %c0_12 = arith.constant 0 : index
    %11 = vector.load %arg4[%c0_10, %c0_11, %c0_12] : memref<64x8x16xf32, #tpu.memory_space<vmem>>, vector<32x8x16xf32>
    tpu.vector_store %arg4[%c0_10, %c0_11, %c0_12], %10 {strides = array<i32>} : memref<64x8x16xf32, #tpu.memory_space<vmem>>, vector<32x8x16xf32>,
    %12 = vector.broadcast %1 : vector<32x1x16xf32> to vector<32x8x16xf32>
    %13 = vector.broadcast %3 : vector<32x8x1xf32> to vector<32x8x16xf32>
    %14 = arith.mulf %12, %13 : vector<32x8x16xf32>
    %15 = vector.broadcast %0 : vector<32x1x16xf32> to vector<32x8x16xf32>
    %16 = vector.broadcast %2 : vector<32x8x1xf32> to vector<32x8x16xf32>
    %17 = arith.mulf %15, %16 : vector<32x8x16xf32>
    %18 = arith.subf %14, %17 : vector<32x8x16xf32>
    %c32 = arith.constant 32 : index
    %c0_13 = arith.constant 0 : index
    %c0_14 = arith.constant 0 : index
    %19 = vector.load %arg4[%c32, %c0_13, %c0_14] : memref<64x8x16xf32, #tpu.memory_space<vmem>>, vector<32x8x16xf32>
    tpu.vector_store %arg4[%c32, %c0_13, %c0_14], %18 {strides = array<i32>} : memref<64x8x16xf32, #tpu.memory_space<vmem>>, vector<32x8x16xf32>,
    return
  }
  func.func @transform_0(%arg0: i32, %arg1: i32) -> (i32, i32, i32) {
    %c0_i32 = arith.constant 0 : i32
    %c0_i32_0 = arith.constant 0 : i32
    %c0_i32_1 = arith.constant 0 : i32
    return %c0_i32, %c0_i32_0, %arg1 : i32, i32, i32
  }
  func.func @transform_1(%arg0: i32, %arg1: i32) -> (i32, i32, i32) {
    %c0_i32 = arith.constant 0 : i32
    %c0_i32_0 = arith.constant 0 : i32
    %c0_i32_1 = arith.constant 0 : i32
    return %c0_i32, %arg0, %c0_i32_0 : i32, i32, i32
  }
  func.func @transform_2(%arg0: i32, %arg1: i32) -> (i32, i32, i32) {
    %c0_i32 = arith.constant 0 : i32
    %c0_i32_0 = arith.constant 0 : i32
    return %c0_i32, %arg0, %arg1 : i32, i32, i32
  }
}

</mosaic_0001>

<llo_original>
// kernel: tpu_custom_call.1
$region0: #{tpu_custom_call.1}
  #allocation0 [shape = 'u32[]', space=smem, size = 0x4, offset = 0x4, fixed_abs, tag = 'smem constant byte address 0x4 - core index']
  #allocation1 [shape = 'u32[72,128]{1,0:T(1,128)}', space=vmem, size = 0x9000, scoped, tag = 'internal scratch']
  %s0 = inlined_call_operand.vmem [shape: f32[32,2,16], index: 0, kind: input, shape index: {}]
  %s1 = inlined_call_operand.vmem [shape: f32[32,16,2], index: 1, kind: input, shape index: {}]
  %s2 = inlined_call_operand.vmem [shape: f32[64,16,16], index: 2, kind: output, shape index: {}]
  %s3 = sld [smem:[#allocation0]]
  $region113: #{tpu_custom_call.1} parent=0
    _
  %s5 = ssub.s32 1, %s3
  %s6 = scalar_select 0, %s5, %s3
  $region1: #{tpu_custom_call.1} parent=0
    #allocation2 [shape = 'u8[262144]{0}', space=vmem, size = 0x40000, scoped, tag = 'input window, operand 1']
    #allocation3 [shape = 'u8[524288]{0}', space=vmem, size = 0x80000, scoped, tag = 'output window, operand 0']
    loop: start=0, step=1, limit=4
    $region2: #{tpu_custom_call.1} parent=1 // loop_pre_header
      _
    $region3: #{tpu_custom_call.1} parent=1 // loop_header
      %s8 = sphi 0, %s12
      %p9 = scmp.ge.s32.totalorder %s8, 4
      %s15 = sphi 0, %s27
      %s16 = sphi 0, %s23
      %s17 = sphi 0, %s15
      %s18 = sphi 0, %s16
      %s19 = sphi 0, %s17
      %s20 = sphi 0, %s18
      %s30 = sphi 0, %s32
      %s33 = sphi 0, %s30
      %s34 = sphi 0, %s33
      %s50 = sphi 0, %s34
      %s56 = sphi 0, %s58
      %s59 = sphi 0, %s56
      %s60 = sphi 0, %s59
      %s76 = sphi 0, %s60
      %s84 = sphi 0, %s86
      %s87 = sphi 0, %s84
      %s88 = sphi 0, %s87
      %s104 = sphi 0, %s88
    $region4: #{tpu_custom_call.1} parent=1 // loop_header_branch
      %11 = sbr.rel (%p9) target = $region8
    $region5: #{tpu_custom_call.1} parent=1 // loop_body
      %s13 = ssub.s32 %s8, 1
      %s14 = ssub.s32 %s8, 2
      %s21 = sadd.s32 1, %s16
      %p22 = scmp.ge.s32.totalorder %s21, 1
      %s23 = scalar_select %p22, 0, %s21
      %s24 = sadd.s32 1, %s15
      %s25 = scalar_select %p22, %s24, %s15
      %p26 = scmp.ge.s32.totalorder %s25, 2
      %s27 = scalar_select %p26, 0, %s25
      %s28 = ssub.s32 %s16, %s23
      %p29 = scmp.eq.s32.totalorder %s28, 0
      %s31 = sadd.s32 %s30, 1
      %s32 = scalar_select %p29, %s30, %s31
      %p35 = pneg %p29
      %p36 = scmp.eq.s32.totalorder %s8, 1
      %p37 = por %p35, %p36
      %p38 = scmp.ne.s32.totalorder %s30, %s33
      %p39 = scmp.eq.s32.totalorder %s8, 0
      %p40 = por %p38, %p39
      %p41 = scmp.ne.s32.totalorder %s30, %s33
      %p42 = scmp.eq.s32.totalorder %s13, 1
      %p43 = por %p41, %p42
      %p44 = scmp.ne.s32.totalorder %s33, %s34
      %p45 = scmp.eq.s32.totalorder %s13, 0
      %p46 = por %p44, %p45
      %p47 = scmp.ne.s32.totalorder %s33, %s34
      %p48 = scmp.eq.s32.totalorder %s14, 1
      %p49 = por %p47, %p48
      %p51 = scmp.ne.s32.totalorder %s34, %s50
      %p52 = scmp.eq.s32.totalorder %s14, 0
      %p53 = por %p51, %p52
      %s54 = ssub.s32 %s15, %s27
      %p55 = scmp.eq.s32.totalorder %s54, 0
      %s57 = sadd.s32 %s56, 1
      %s58 = scalar_select %p55, %s56, %s57
      %p61 = pneg %p55
      %p62 = scmp.eq.s32.totalorder %s8, 1
      %p63 = por %p61, %p62
      %p64 = scmp.ne.s32.totalorder %s56, %s59
      %p65 = scmp.eq.s32.totalorder %s8, 0
      %p66 = por %p64, %p65
      %p67 = scmp.ne.s32.totalorder %s56, %s59
      %p68 = scmp.eq.s32.totalorder %s13, 1
      %p69 = por %p67, %p68
      %p70 = scmp.ne.s32.totalorder %s59, %s60
      %p71 = scmp.eq.s32.totalorder %s13, 0
      %p72 = por %p70, %p71
      %p73 = scmp.ne.s32.totalorder %s59, %s60
      %p74 = scmp.eq.s32.totalorder %s14, 1
      %p75 = por %p73, %p74
      %p77 = scmp.ne.s32.totalorder %s60, %s76
      %p78 = scmp.eq.s32.totalorder %s14, 0
      %p79 = por %p77, %p78
      %s80 = ssub.s32 %s15, %s27
      %s81 = ssub.s32 %s16, %s23
      %s82 = sor.u32 %s80, %s81
      %p83 = scmp.eq.s32.totalorder %s82, 0
      %s85 = sadd.s32 %s84, 1
      %s86 = scalar_select %p83, %s84, %s85
      %p89 = pneg %p83
      %p90 = scmp.eq.s32.totalorder %s8, 1
      %p91 = por %p89, %p90
      %p92 = scmp.ne.s32.totalorder %s84, %s87
      %p93 = scmp.eq.s32.totalorder %s8, 0
      %p94 = por %p92, %p93
      %p95 = scmp.ne.s32.totalorder %s84, %s87
      %p96 = scmp.eq.s32.totalorder %s13, 1
      %p97 = por %p95, %p96
      %p98 = scmp.ne.s32.totalorder %s87, %s88
      %p99 = scmp.eq.s32.totalorder %s13, 0
      %p100 = por %p98, %p99
      %p101 = scmp.ne.s32.totalorder %s87, %s88
      %p102 = scmp.eq.s32.totalorder %s14, 1
      %p103 = por %p101, %p102
      %p105 = scmp.ne.s32.totalorder %s88, %s104
      %p106 = scmp.eq.s32.totalorder %s14, 0
      %p107 = por %p105, %p106
      %p108 = scmp.le.s32.totalorder 1, %s8
      %p109 = scmp.lt.s32.totalorder %s8, 3
      %p110 = pnand %p108, %p109
      %p111 = pneg %p110
      // Predicated region
      $region9: #{tpu_custom_call.1} parent=5 // pred_check
        _
      $region10: #{tpu_custom_call.1} parent=5 // pred_check_branch
        %113 = sbr.rel (%p110) target = $region12
      $region11: #{tpu_custom_call.1} parent=5 // pred_region
        %s114 = ssub.s32 %s8, 1
        // Predicated region
        $region13: #{tpu_custom_call.1} parent=11 // pred_check
          %p115 = pneg %p46
        $region14: #{tpu_custom_call.1} parent=11 // pred_check_branch
          %117 = sbr.rel (%p115) target = $region16
        $region15: #{tpu_custom_call.1} parent=11 // pred_region
          %p118 = scmp.lt.s32.totalorder %s18, 0
          %s119 = scalar_select %p118, %s18, 0
          %s120 = smul.addr %s119, 2
          %s121 = scalar_lea.vmem %s0, %s120
        $region16: #{tpu_custom_call.1} parent=11 // pred_fallthru
          _
      $region12: #{tpu_custom_call.1} parent=5 // pred_fallthru
        _
      %p122 = scmp.lt.s32.totalorder %s8, 2
      // Predicated region
      $region17: #{tpu_custom_call.1} parent=5 // pred_check
        %p123 = pneg %p122
      $region18: #{tpu_custom_call.1} parent=5 // pred_check_branch
        %125 = sbr.rel (%p123) target = $region20
      $region19: #{tpu_custom_call.1} parent=5 // pred_region
        // Predicated region
        $region21: #{tpu_custom_call.1} parent=19 // pred_check
          %p126 = pneg %p66
        $region22: #{tpu_custom_call.1} parent=19 // pred_check_branch
          %128 = sbr.rel (%p126) target = $region24
        $region23: #{tpu_custom_call.1} parent=19 // pred_region
          %s129 = sand.u32 %s56, 1
          %s130 = sand.u32 %s56, 1
          %s131 = smul.addr %s130, 256
          %s132 = scalar_lea.vmem [#allocation2], %s131
          %s133 = smul.addr %s15, 8
          %s134 = scalar_lea.vmem %s1, %s133
          // Predicated region
          $region25: #{tpu_custom_call.1} parent=23 // pred_check
            _
          $region26: #{tpu_custom_call.1} parent=23 // pred_check_branch
            %136 = sbr.rel (0) target = $region28
          $region27: #{tpu_custom_call.1} parent=23 // pred_region
            // Predicated region
            $region29: #{tpu_custom_call.1} parent=27 // pred_check
              _
            $region30: #{tpu_custom_call.1} parent=27 // pred_check_branch
              %138 = sbr.rel (0) target = $region32
            $region31: #{tpu_custom_call.1} parent=27 // pred_region
              // Predicated region
              $region44: #{tpu_custom_call.1} parent=31 // pred_check
                _
              $region45: #{tpu_custom_call.1} parent=31 // pred_check_branch
                %216 = sbr.rel (0) target = $region47
              $region46: #{tpu_custom_call.1} parent=31 // pred_region
                loop: start=0, step=1, limit=1
                $region48: #{tpu_custom_call.1} parent=46 // loop_pre_header
                  _
                $region49: #{tpu_custom_call.1} parent=46 // loop_header
                  %s218 = sphi 0, %s222
                  %p219 = scmp.ge.s32.totalorder %s218, 1
                  %s223 = sphi %s134, %s134
                  %s224 = sphi %s132, %s132
                $region50: #{tpu_custom_call.1} parent=46 // loop_header_branch
                  %221 = sbr.rel (%p219) target = $region54
                $region51: #{tpu_custom_call.1} parent=46 // loop_body
                  %v225 = vld [vmem:[%s223] sm:$0xff]
                  %226 = vst [vmem:[%s224] sm:$0xff] %v225
                  %v227 = vld [vmem:[%s223 + $0x10] sm:$0xff]
                  %228 = vst [vmem:[%s224 + $0x8] sm:$0xff] %v227
                  %v229 = vld [vmem:[%s223 + $0x20] sm:$0xff]
                  %230 = vst [vmem:[%s224 + $0x10] sm:$0xff] %v229
                  %v231 = vld [vmem:[%s223 + $0x30] sm:$0xff]
                  %232 = vst [vmem:[%s224 + $0x18] sm:$0xff] %v231
                  %v233 = vld [vmem:[%s223 + $0x40] sm:$0xff]
                  %234 = vst [vmem:[%s224 + $0x20] sm:$0xff] %v233
                  %v235 = vld [vmem:[%s223 + $0x50] sm:$0xff]
                  %236 = vst [vmem:[%s224 + $0x28] sm:$0xff] %v235
                  %v237 = vld [vmem:[%s223 + $0x60] sm:$0xff]
                  %238 = vst [vmem:[%s224 + $0x30] sm:$0xff] %v237
                  %v239 = vld [vmem:[%s223 + $0x70] sm:$0xff]
                  %240 = vst [vmem:[%s224 + $0x38] sm:$0xff] %v239
                  %v241 = vld [vmem:[%s223 + $0x80] sm:$0xff]
                  %242 = vst [vmem:[%s224 + $0x40] sm:$0xff] %v241
                  %v243 = vld [vmem:[%s223 + $0x90] sm:$0xff]
                  %244 = vst [vmem:[%s224 + $0x48] sm:$0xff] %v243
                  %v245 = vld [vmem:[%s223 + $0xa0] sm:$0xff]
                  %246 = vst [vmem:[%s224 + $0x50] sm:$0xff] %v245
                  %v247 = vld [vmem:[%s223 + $0xb0] sm:$0xff]
                  %248 = vst [vmem:[%s224 + $0x58] sm:$0xff] %v247
                  %v249 = vld [vmem:[%s223 + $0xc0] sm:$0xff]
                  %250 = vst [vmem:[%s224 + $0x60] sm:$0xff] %v249
                  %v251 = vld [vmem:[%s223 + $0xd0] sm:$0xff]
                  %252 = vst [vmem:[%s224 + $0x68] sm:$0xff] %v251
                  %v253 = vld [vmem:[%s223 + $0xe0] sm:$0xff]
                  %254 = vst [vmem:[%s224 + $0x70] sm:$0xff] %v253
                  %v255 = vld [vmem:[%s223 + $0xf0] sm:$0xff]
                  %256 = vst [vmem:[%s224 + $0x78] sm:$0xff] %v255
                  %v257 = vld [vmem:[%s223 + $0x100] sm:$0xff]
                  %258 = vst [vmem:[%s224 + $0x80] sm:$0xff] %v257
                  %v259 = vld [vmem:[%s223 + $0x110] sm:$0xff]
                  %260 = vst [vmem:[%s224 + $0x88] sm:$0xff] %v259
                  %v261 = vld [vmem:[%s223 + $0x120] sm:$0xff]
                  %262 = vst [vmem:[%s224 + $0x90] sm:$0xff] %v261
                  %v263 = vld [vmem:[%s223 + $0x130] sm:$0xff]
                  %264 = vst [vmem:[%s224 + $0x98] sm:$0xff] %v263
                  %v265 = vld [vmem:[%s223 + $0x140] sm:$0xff]
                  %266 = vst [vmem:[%s224 + $0xa0] sm:$0xff] %v265
                  %v267 = vld [vmem:[%s223 + $0x150] sm:$0xff]
                  %268 = vst [vmem:[%s224 + $0xa8] sm:$0xff] %v267
                  %v269 = vld [vmem:[%s223 + $0x160] sm:$0xff]
                  %270 = vst [vmem:[%s224 + $0xb0] sm:$0xff] %v269
                  %v271 = vld [vmem:[%s223 + $0x170] sm:$0xff]
                  %272 = vst [vmem:[%s224 + $0xb8] sm:$0xff] %v271
                  %v273 = vld [vmem:[%s223 + $0x180] sm:$0xff]
                  %274 = vst [vmem:[%s224 + $0xc0] sm:$0xff] %v273
                  %v275 = vld [vmem:[%s223 + $0x190] sm:$0xff]
                  %276 = vst [vmem:[%s224 + $0xc8] sm:$0xff] %v275
                  %v277 = vld [vmem:[%s223 + $0x1a0] sm:$0xff]
                  %278 = vst [vmem:[%s224 + $0xd0] sm:$0xff] %v277
                  %v279 = vld [vmem:[%s223 + $0x1b0] sm:$0xff]
                  %280 = vst [vmem:[%s224 + $0xd8] sm:$0xff] %v279
                  %v281 = vld [vmem:[%s223 + $0x1c0] sm:$0xff]
                  %282 = vst [vmem:[%s224 + $0xe0] sm:$0xff] %v281
                  %v283 = vld [vmem:[%s223 + $0x1d0] sm:$0xff]
                  %284 = vst [vmem:[%s224 + $0xe8] sm:$0xff] %v283
                  %v285 = vld [vmem:[%s223 + $0x1e0] sm:$0xff]
                  %286 = vst [vmem:[%s224 + $0xf0] sm:$0xff] %v285
                  %v287 = vld [vmem:[%s223 + $0x1f0] sm:$0xff]
                  %288 = vst [vmem:[%s224 + $0xf8] sm:$0xff] %v287
                $region52: #{tpu_custom_call.1} parent=46 // loop_footer
                  %s222 = sadd.s32 1, %s218
                $region53: #{tpu_custom_call.1} parent=46 // loop_footer_branch
                  %217 = sbr.rel target = $region49
                $region54: #{tpu_custom_call.1} parent=46 // loop_exit
                  _
              $region47: #{tpu_custom_call.1} parent=31 // pred_fallthru
                _
              // Predicated region
              $region55: #{tpu_custom_call.1} parent=31 // pred_check
                _
              $region56: #{tpu_custom_call.1} parent=31 // pred_check_branch
                %290 = sbr.rel target = $region58
              $region57: #{tpu_custom_call.1} parent=31 // pred_region
                _
              $region58: #{tpu_custom_call.1} parent=31 // pred_fallthru
                _
            $region32: #{tpu_custom_call.1} parent=27 // pred_fallthru
              _
            // Predicated region
            $region33: #{tpu_custom_call.1} parent=27 // pred_check
              _
            $region34: #{tpu_custom_call.1} parent=27 // pred_check_branch
              %140 = sbr.rel target = $region36
            $region35: #{tpu_custom_call.1} parent=27 // pred_region
              %s142 = ssub.s32 256, 1
              loop: start=0, step=1, limit=1
              $region37: #{tpu_custom_call.1} parent=35 // loop_pre_header
                _
              $region38: #{tpu_custom_call.1} parent=35 // loop_header
                %s144 = sphi 0, %s148
                %p145 = scmp.ge.s32.totalorder %s144, 1
                %s149 = sphi %s134, %s134
                %s150 = sphi %s132, %s132
              $region39: #{tpu_custom_call.1} parent=35 // loop_header_branch
                %147 = sbr.rel (%p145) target = $region43
              $region40: #{tpu_custom_call.1} parent=35 // loop_body
                %v151 = vld [vmem:[%s149] sm:%s142]
                %152 = vst [vmem:[%s150] sm:%s142] %v151
                %v153 = vld [vmem:[%s149 + $0x10] sm:%s142]
                %154 = vst [vmem:[%s150 + $0x8] sm:%s142] %v153
                %v155 = vld [vmem:[%s149 + $0x20] sm:%s142]
                %156 = vst [vmem:[%s150 + $0x10] sm:%s142] %v155
                %v157 = vld [vmem:[%s149 + $0x30] sm:%s142]
                %158 = vst [vmem:[%s150 + $0x18] sm:%s142] %v157
                %v159 = vld [vmem:[%s149 + $0x40] sm:%s142]
                %160 = vst [vmem:[%s150 + $0x20] sm:%s142] %v159
                %v161 = vld [vmem:[%s149 + $0x50] sm:%s142]
                %162 = vst [vmem:[%s150 + $0x28] sm:%s142] %v161
                %v163 = vld [vmem:[%s149 + $0x60] sm:%s142]
                %164 = vst [vmem:[%s150 + $0x30] sm:%s142] %v163
                %v165 = vld [vmem:[%s149 + $0x70] sm:%s142]
                %166 = vst [vmem:[%s150 + $0x38] sm:%s142] %v165
                %v167 = vld [vmem:[%s149 + $0x80] sm:%s142]
                %168 = vst [vmem:[%s150 + $0x40] sm:%s142] %v167
                %v169 = vld [vmem:[%s149 + $0x90] sm:%s142]
                %170 = vst [vmem:[%s150 + $0x48] sm:%s142] %v169
                %v171 = vld [vmem:[%s149 + $0xa0] sm:%s142]
                %172 = vst [vmem:[%s150 + $0x50] sm:%s142] %v171
                %v173 = vld [vmem:[%s149 + $0xb0] sm:%s142]
                %174 = vst [vmem:[%s150 + $0x58] sm:%s142] %v173
                %v175 = vld [vmem:[%s149 + $0xc0] sm:%s142]
                %176 = vst [vmem:[%s150 + $0x60] sm:%s142] %v175
                %v177 = vld [vmem:[%s149 + $0xd0] sm:%s142]
                %178 = vst [vmem:[%s150 + $0x68] sm:%s142] %v177
                %v179 = vld [vmem:[%s149 + $0xe0] sm:%s142]
                %180 = vst [vmem:[%s150 + $0x70] sm:%s142] %v179
                %v181 = vld [vmem:[%s149 + $0xf0] sm:%s142]
                %182 = vst [vmem:[%s150 + $0x78] sm:%s142] %v181
                %v183 = vld [vmem:[%s149 + $0x100] sm:%s142]
                %184 = vst [vmem:[%s150 + $0x80] sm:%s142] %v183
                %v185 = vld [vmem:[%s149 + $0x110] sm:%s142]
                %186 = vst [vmem:[%s150 + $0x88] sm:%s142] %v185
                %v187 = vld [vmem:[%s149 + $0x120] sm:%s142]
                %188 = vst [vmem:[%s150 + $0x90] sm:%s142] %v187
                %v189 = vld [vmem:[%s149 + $0x130] sm:%s142]
                %190 = vst [vmem:[%s150 + $0x98] sm:%s142] %v189
                %v191 = vld [vmem:[%s149 + $0x140] sm:%s142]
                %192 = vst [vmem:[%s150 + $0xa0] sm:%s142] %v191
                %v193 = vld [vmem:[%s149 + $0x150] sm:%s142]
                %194 = vst [vmem:[%s150 + $0xa8] sm:%s142] %v193
                %v195 = vld [vmem:[%s149 + $0x160] sm:%s142]
                %196 = vst [vmem:[%s150 + $0xb0] sm:%s142] %v195
                %v197 = vld [vmem:[%s149 + $0x170] sm:%s142]
                %198 = vst [vmem:[%s150 + $0xb8] sm:%s142] %v197
                %v199 = vld [vmem:[%s149 + $0x180] sm:%s142]
                %200 = vst [vmem:[%s150 + $0xc0] sm:%s142] %v199
                %v201 = vld [vmem:[%s149 + $0x190] sm:%s142]
                %202 = vst [vmem:[%s150 + $0xc8] sm:%s142] %v201
                %v203 = vld [vmem:[%s149 + $0x1a0] sm:%s142]
                %204 = vst [vmem:[%s150 + $0xd0] sm:%s142] %v203
                %v205 = vld [vmem:[%s149 + $0x1b0] sm:%s142]
                %206 = vst [vmem:[%s150 + $0xd8] sm:%s142] %v205
                %v207 = vld [vmem:[%s149 + $0x1c0] sm:%s142]
                %208 = vst [vmem:[%s150 + $0xe0] sm:%s142] %v207
                %v209 = vld [vmem:[%s149 + $0x1d0] sm:%s142]
                %210 = vst [vmem:[%s150 + $0xe8] sm:%s142] %v209
                %v211 = vld [vmem:[%s149 + $0x1e0] sm:%s142]
                %212 = vst [vmem:[%s150 + $0xf0] sm:%s142] %v211
                %v213 = vld [vmem:[%s149 + $0x1f0] sm:%s142]
                %214 = vst [vmem:[%s150 + $0xf8] sm:%s142] %v213
              $region41: #{tpu_custom_call.1} parent=35 // loop_footer
                %s148 = sadd.s32 1, %s144
              $region42: #{tpu_custom_call.1} parent=35 // loop_footer_branch
                %143 = sbr.rel target = $region38
              $region43: #{tpu_custom_call.1} parent=35 // loop_exit
                _
            $region36: #{tpu_custom_call.1} parent=27 // pred_fallthru
              _
          $region28: #{tpu_custom_call.1} parent=23 // pred_fallthru
            _
          %291 = vnop
        $region24: #{tpu_custom_call.1} parent=19 // pred_fallthru
          _
      $region20: #{tpu_custom_call.1} parent=5 // pred_fallthru
        _
      %p292 = scmp.le.s32.totalorder 1, %s8
      %p293 = scmp.lt.s32.totalorder %s8, 3
      %p294 = pnand %p292, %p293
      %p295 = pneg %p294
      // Predicated region
      $region59: #{tpu_custom_call.1} parent=5 // pred_check
        _
      $region60: #{tpu_custom_call.1} parent=5 // pred_check_branch
        %297 = sbr.rel (%p294) target = $region62
      $region61: #{tpu_custom_call.1} parent=5 // pred_region
        %s298 = ssub.s32 %s8, 1
        %s299 = sand.u32 %s59, 1
        %s300 = sand.u32 %s59, 1
        %s301 = smul.addr %s300, 256
        %s302 = scalar_lea.vmem [#allocation2], %s301
        // Predicated region
        $region63: #{tpu_custom_call.1} parent=61 // pred_check
          %p303 = pneg %p72
        $region64: #{tpu_custom_call.1} parent=61 // pred_check_branch
          %305 = sbr.rel (%p303) target = $region66
        $region65: #{tpu_custom_call.1} parent=61 // pred_region
          _
        $region66: #{tpu_custom_call.1} parent=61 // pred_fallthru
          _
        %p306 = scmp.lt.s32.totalorder %s18, 0
        %s307 = scalar_select %p306, %s18, 0
        %s308 = smul.addr %s307, 2
        %s309 = scalar_lea.vmem %s0, %s308
        %p310 = pneg %p46
        %p311 = pneg %p43
        %s312 = sand.u32 %s59, 1
        %s313 = sand.u32 %s59, 1
        %s314 = smul.addr %s313, 256
        %s315 = scalar_lea.vmem [#allocation2], %s314
        %p316 = pneg %p72
        %p317 = pneg %p69
        %p318 = pneg %p100
        %p319 = pneg %p97
        %s320 = sand.u32 %s87, 1
        %s321 = sand.u32 %s87, 1
        %s322 = smul.addr %s321, 512
        %s323 = scalar_lea.vmem [#allocation3], %s322
        %p324 = scmp.lt.s32.totalorder %s18, 0
        %s325 = scalar_select %p324, %s18, 0
        %s326 = smul.addr %s325, 2
        %s327 = scalar_lea.vmem %s0, %s326
        %v328 = vld [vmem:[%s327] sm:$0x1]
        %v329 = vld [vmem:[%s327 + $0x2] sm:$0x1]
        %v330 = vld [vmem:[%s327 + $0x4] sm:$0x1]
        %v331 = vld [vmem:[%s327 + $0x6] sm:$0x1]
        %v332 = vld [vmem:[%s327 + $0x8] sm:$0x1]
        %v333 = vld [vmem:[%s327 + $0xa] sm:$0x1]
        %v334 = vld [vmem:[%s327 + $0xc] sm:$0x1]
        %v335 = vld [vmem:[%s327 + $0xe] sm:$0x1]
        %v336 = vld [vmem:[%s327 + $0x10] sm:$0x1]
        %v337 = vld [vmem:[%s327 + $0x12] sm:$0x1]
        %v338 = vld [vmem:[%s327 + $0x14] sm:$0x1]
        %v339 = vld [vmem:[%s327 + $0x16] sm:$0x1]
        %v340 = vld [vmem:[%s327 + $0x18] sm:$0x1]
        %v341 = vld [vmem:[%s327 + $0x1a] sm:$0x1]
        %v342 = vld [vmem:[%s327 + $0x1c] sm:$0x1]
        %v343 = vld [vmem:[%s327 + $0x1e] sm:$0x1]
        %v344 = vld [vmem:[%s327 + $0x20] sm:$0x1]
        %v345 = vld [vmem:[%s327 + $0x22] sm:$0x1]
        %v346 = vld [vmem:[%s327 + $0x24] sm:$0x1]
        %v347 = vld [vmem:[%s327 + $0x26] sm:$0x1]
        %v348 = vld [vmem:[%s327 + $0x28] sm:$0x1]
        %v349 = vld [vmem:[%s327 + $0x2a] sm:$0x1]
        %v350 = vld [vmem:[%s327 + $0x2c] sm:$0x1]
        %v351 = vld [vmem:[%s327 + $0x2e] sm:$0x1]
        %v352 = vld [vmem:[%s327 + $0x30] sm:$0x1]
        %v353 = vld [vmem:[%s327 + $0x32] sm:$0x1]
        %v354 = vld [vmem:[%s327 + $0x34] sm:$0x1]
        %v355 = vld [vmem:[%s327 + $0x36] sm:$0x1]
        %v356 = vld [vmem:[%s327 + $0x38] sm:$0x1]
        %v357 = vld [vmem:[%s327 + $0x3a] sm:$0x1]
        %v358 = vld [vmem:[%s327 + $0x3c] sm:$0x1]
        %v359 = vld [vmem:[%s327 + $0x3e] sm:$0x1]
        %v360 = vld [vmem:[%s327 + $0x1] sm:$0x1]
        %v361 = vld [vmem:[%s327 + $0x3] sm:$0x1]
        %v362 = vld [vmem:[%s327 + $0x5] sm:$0x1]
        %v363 = vld [vmem:[%s327 + $0x7] sm:$0x1]
        %v364 = vld [vmem:[%s327 + $0x9] sm:$0x1]
        %v365 = vld [vmem:[%s327 + $0xb] sm:$0x1]
        %v366 = vld [vmem:[%s327 + $0xd] sm:$0x1]
        %v367 = vld [vmem:[%s327 + $0xf] sm:$0x1]
        %v368 = vld [vmem:[%s327 + $0x11] sm:$0x1]
        %v369 = vld [vmem:[%s327 + $0x13] sm:$0x1]
        %v370 = vld [vmem:[%s327 + $0x15] sm:$0x1]
        %v371 = vld [vmem:[%s327 + $0x17] sm:$0x1]
        %v372 = vld [vmem:[%s327 + $0x19] sm:$0x1]
        %v373 = vld [vmem:[%s327 + $0x1b] sm:$0x1]
        %v374 = vld [vmem:[%s327 + $0x1d] sm:$0x1]
        %v375 = vld [vmem:[%s327 + $0x1f] sm:$0x1]
        %v376 = vld [vmem:[%s327 + $0x21] sm:$0x1]
        %v377 = vld [vmem:[%s327 + $0x23] sm:$0x1]
        %v378 = vld [vmem:[%s327 + $0x25] sm:$0x1]
        %v379 = vld [vmem:[%s327 + $0x27] sm:$0x1]
        %v380 = vld [vmem:[%s327 + $0x29] sm:$0x1]
        %v381 = vld [vmem:[%s327 + $0x2b] sm:$0x1]
        %v382 = vld [vmem:[%s327 + $0x2d] sm:$0x1]
        %v383 = vld [vmem:[%s327 + $0x2f] sm:$0x1]
        %v384 = vld [vmem:[%s327 + $0x31] sm:$0x1]
        %v385 = vld [vmem:[%s327 + $0x33] sm:$0x1]
        %v386 = vld [vmem:[%s327 + $0x35] sm:$0x1]
        %v387 = vld [vmem:[%s327 + $0x37] sm:$0x1]
        %v388 = vld [vmem:[%s327 + $0x39] sm:$0x1]
        %v389 = vld [vmem:[%s327 + $0x3b] sm:$0x1]
        %v390 = vld [vmem:[%s327 + $0x3d] sm:$0x1]
        %v391 = vld [vmem:[%s327 + $0x3f] sm:$0x1]
        %v392 = vld [vmem:[%s302] sm:$0xff]
        %v393 = vld [vmem:[%s302 + $0x8] sm:$0xff]
        %v394 = vld [vmem:[%s302 + $0x10] sm:$0xff]
        %v395 = vld [vmem:[%s302 + $0x18] sm:$0xff]
        %v396 = vld [vmem:[%s302 + $0x20] sm:$0xff]
        %v397 = vld [vmem:[%s302 + $0x28] sm:$0xff]
        %v398 = vld [vmem:[%s302 + $0x30] sm:$0xff]
        %v399 = vld [vmem:[%s302 + $0x38] sm:$0xff]
        %v400 = vld [vmem:[%s302 + $0x40] sm:$0xff]
        %v401 = vld [vmem:[%s302 + $0x48] sm:$0xff]
        %v402 = vld [vmem:[%s302 + $0x50] sm:$0xff]
        %v403 = vld [vmem:[%s302 + $0x58] sm:$0xff]
        %v404 = vld [vmem:[%s302 + $0x60] sm:$0xff]
        %v405 = vld [vmem:[%s302 + $0x68] sm:$0xff]
        %v406 = vld [vmem:[%s302 + $0x70] sm:$0xff]
        %v407 = vld [vmem:[%s302 + $0x78] sm:$0xff]
        %v408 = vld [vmem:[%s302 + $0x80] sm:$0xff]
        %v409 = vld [vmem:[%s302 + $0x88] sm:$0xff]
        %v410 = vld [vmem:[%s302 + $0x90] sm:$0xff]
        %v411 = vld [vmem:[%s302 + $0x98] sm:$0xff]
        %v412 = vld [vmem:[%s302 + $0xa0] sm:$0xff]
        %v413 = vld [vmem:[%s302 + $0xa8] sm:$0xff]
        %v414 = vld [vmem:[%s302 + $0xb0] sm:$0xff]
        %v415 = vld [vmem:[%s302 + $0xb8] sm:$0xff]
        %v416 = vld [vmem:[%s302 + $0xc0] sm:$0xff]
        %v417 = vld [vmem:[%s302 + $0xc8] sm:$0xff]
        %v418 = vld [vmem:[%s302 + $0xd0] sm:$0xff]
        %v419 = vld [vmem:[%s302 + $0xd8] sm:$0xff]
        %v420 = vld [vmem:[%s302 + $0xe0] sm:$0xff]
        %v421 = vld [vmem:[%s302 + $0xe8] sm:$0xff]
        %v422 = vld [vmem:[%s302 + $0xf0] sm:$0xff]
        %v423 = vld [vmem:[%s302 + $0xf8] sm:$0xff]
        %v424 = vperm.slane %v328, 0
        %v425 = vperm.slane %v329, 0
        %v426 = vperm.slane %v330, 0
        %v427 = vperm.slane %v331, 0
        %v428 = vperm.slane %v332, 0
        %v429 = vperm.slane %v333, 0
        %v430 = vperm.slane %v334, 0
        %v431 = vperm.slane %v335, 0
        %v432 = vperm.slane %v336, 0
        %v433 = vperm.slane %v337, 0
        %v434 = vperm.slane %v338, 0
        %v435 = vperm.slane %v339, 0
        %v436 = vperm.slane %v340, 0
        %v437 = vperm.slane %v341, 0
        %v438 = vperm.slane %v342, 0
        %v439 = vperm.slane %v343, 0
        %v440 = vperm.slane %v344, 0
        %v441 = vperm.slane %v345, 0
        %v442 = vperm.slane %v346, 0
        %v443 = vperm.slane %v347, 0
        %v444 = vperm.slane %v348, 0
        %v445 = vperm.slane %v349, 0
        %v446 = vperm.slane %v350, 0
        %v447 = vperm.slane %v351, 0
        %v448 = vperm.slane %v352, 0
        %v449 = vperm.slane %v353, 0
        %v450 = vperm.slane %v354, 0
        %v451 = vperm.slane %v355, 0
        %v452 = vperm.slane %v356, 0
        %v453 = vperm.slane %v357, 0
        %v454 = vperm.slane %v358, 0
        %v455 = vperm.slane %v359, 0
        %457 = vset.pattern.permute.xlu0 1
        %458 = vperm.xlu0 %457, %v392
        %v459 = vpop.permute.xlu0 %458
        %462 = vset.pattern.permute.xlu0 1
        %463 = vperm.xlu0 %462, %v393
        %v464 = vpop.permute.xlu0 %463
        %467 = vset.pattern.permute.xlu0 1
        %468 = vperm.xlu0 %467, %v394
        %v469 = vpop.permute.xlu0 %468
        %472 = vset.pattern.permute.xlu0 1
        %473 = vperm.xlu0 %472, %v395
        %v474 = vpop.permute.xlu0 %473
        %477 = vset.pattern.permute.xlu0 1
        %478 = vperm.xlu0 %477, %v396
        %v479 = vpop.permute.xlu0 %478
        %482 = vset.pattern.permute.xlu0 1
        %483 = vperm.xlu0 %482, %v397
        %v484 = vpop.permute.xlu0 %483
        %487 = vset.pattern.permute.xlu0 1
        %488 = vperm.xlu0 %487, %v398
        %v489 = vpop.permute.xlu0 %488
        %492 = vset.pattern.permute.xlu0 1
        %493 = vperm.xlu0 %492, %v399
        %v494 = vpop.permute.xlu0 %493
        %497 = vset.pattern.permute.xlu0 1
        %498 = vperm.xlu0 %497, %v400
        %v499 = vpop.permute.xlu0 %498
        %502 = vset.pattern.permute.xlu0 1
        %503 = vperm.xlu0 %502, %v401
        %v504 = vpop.permute.xlu0 %503
        %507 = vset.pattern.permute.xlu0 1
        %508 = vperm.xlu0 %507, %v402
        %v509 = vpop.permute.xlu0 %508
        %512 = vset.pattern.permute.xlu0 1
        %513 = vperm.xlu0 %512, %v403
        %v514 = vpop.permute.xlu0 %513
        %517 = vset.pattern.permute.xlu0 1
        %518 = vperm.xlu0 %517, %v404
        %v519 = vpop.permute.xlu0 %518
        %522 = vset.pattern.permute.xlu0 1
        %523 = vperm.xlu0 %522, %v405
        %v524 = vpop.permute.xlu0 %523
        %527 = vset.pattern.permute.xlu0 1
        %528 = vperm.xlu0 %527, %v406
        %v529 = vpop.permute.xlu0 %528
        %532 = vset.pattern.permute.xlu0 1
        %533 = vperm.xlu0 %532, %v407
        %v534 = vpop.permute.xlu0 %533
        %537 = vset.pattern.permute.xlu0 1
        %538 = vperm.xlu0 %537, %v408
        %v539 = vpop.permute.xlu0 %538
        %542 = vset.pattern.permute.xlu0 1
        %543 = vperm.xlu0 %542, %v409
        %v544 = vpop.permute.xlu0 %543
        %547 = vset.pattern.permute.xlu0 1
        %548 = vperm.xlu0 %547, %v410
        %v549 = vpop.permute.xlu0 %548
        %552 = vset.pattern.permute.xlu0 1
        %553 = vperm.xlu0 %552, %v411
        %v554 = vpop.permute.xlu0 %553
        %557 = vset.pattern.permute.xlu0 1
        %558 = vperm.xlu0 %557, %v412
        %v559 = vpop.permute.xlu0 %558
        %562 = vset.pattern.permute.xlu0 1
        %563 = vperm.xlu0 %562, %v413
        %v564 = vpop.permute.xlu0 %563
        %567 = vset.pattern.permute.xlu0 1
        %568 = vperm.xlu0 %567, %v414
        %v569 = vpop.permute.xlu0 %568
        %572 = vset.pattern.permute.xlu0 1
        %573 = vperm.xlu0 %572, %v415
        %v574 = vpop.permute.xlu0 %573
        %577 = vset.pattern.permute.xlu0 1
        %578 = vperm.xlu0 %577, %v416
        %v579 = vpop.permute.xlu0 %578
        %582 = vset.pattern.permute.xlu0 1
        %583 = vperm.xlu0 %582, %v417
        %v584 = vpop.permute.xlu0 %583
        %587 = vset.pattern.permute.xlu0 1
        %588 = vperm.xlu0 %587, %v418
        %v589 = vpop.permute.xlu0 %588
        %592 = vset.pattern.permute.xlu0 1
        %593 = vperm.xlu0 %592, %v419
        %v594 = vpop.permute.xlu0 %593
        %597 = vset.pattern.permute.xlu0 1
        %598 = vperm.xlu0 %597, %v420
        %v599 = vpop.permute.xlu0 %598
        %602 = vset.pattern.permute.xlu0 1
        %603 = vperm.xlu0 %602, %v421
        %v604 = vpop.permute.xlu0 %603
        %607 = vset.pattern.permute.xlu0 1
        %608 = vperm.xlu0 %607, %v422
        %v609 = vpop.permute.xlu0 %608
        %612 = vset.pattern.permute.xlu0 1
        %613 = vperm.xlu0 %612, %v423
        %v614 = vpop.permute.xlu0 %613
        %v616 = vmul.f32 %v424, %v459
        %v617 = vmul.f32 %v425, %v464
        %v618 = vmul.f32 %v426, %v469
        %v619 = vmul.f32 %v427, %v474
        %v620 = vmul.f32 %v428, %v479
        %v621 = vmul.f32 %v429, %v484
        %v622 = vmul.f32 %v430, %v489
        %v623 = vmul.f32 %v431, %v494
        %v624 = vmul.f32 %v432, %v499
        %v625 = vmul.f32 %v433, %v504
        %v626 = vmul.f32 %v434, %v509
        %v627 = vmul.f32 %v435, %v514
        %v628 = vmul.f32 %v436, %v519
        %v629 = vmul.f32 %v437, %v524
        %v630 = vmul.f32 %v438, %v529
        %v631 = vmul.f32 %v439, %v534
        %v632 = vmul.f32 %v440, %v539
        %v633 = vmul.f32 %v441, %v544
        %v634 = vmul.f32 %v442, %v549
        %v635 = vmul.f32 %v443, %v554
        %v636 = vmul.f32 %v444, %v559
        %v637 = vmul.f32 %v445, %v564
        %v638 = vmul.f32 %v446, %v569
        %v639 = vmul.f32 %v447, %v574
        %v640 = vmul.f32 %v448, %v579
        %v641 = vmul.f32 %v449, %v584
        %v642 = vmul.f32 %v450, %v589
        %v643 = vmul.f32 %v451, %v594
        %v644 = vmul.f32 %v452, %v599
        %v645 = vmul.f32 %v453, %v604
        %v646 = vmul.f32 %v454, %v609
        %v647 = vmul.f32 %v455, %v614
        %v648 = vperm.slane %v360, 0
        %v649 = vperm.slane %v361, 0
        %v650 = vperm.slane %v362, 0
        %v651 = vperm.slane %v363, 0
        %v652 = vperm.slane %v364, 0
        %v653 = vperm.slane %v365, 0
        %v654 = vperm.slane %v366, 0
        %v655 = vperm.slane %v367, 0
        %v656 = vperm.slane %v368, 0
        %v657 = vperm.slane %v369, 0
        %v658 = vperm.slane %v370, 0
        %v659 = vperm.slane %v371, 0
        %v660 = vperm.slane %v372, 0
        %v661 = vperm.slane %v373, 0
        %v662 = vperm.slane %v374, 0
        %v663 = vperm.slane %v375, 0
        %v664 = vperm.slane %v376, 0
        %v665 = vperm.slane %v377, 0
        %v666 = vperm.slane %v378, 0
        %v667 = vperm.slane %v379, 0
        %v668 = vperm.slane %v380, 0
        %v669 = vperm.slane %v381, 0
        %v670 = vperm.slane %v382, 0
        %v671 = vperm.slane %v383, 0
        %v672 = vperm.slane %v384, 0
        %v673 = vperm.slane %v385, 0
        %v674 = vperm.slane %v386, 0
        %v675 = vperm.slane %v387, 0
        %v676 = vperm.slane %v388, 0
        %v677 = vperm.slane %v389, 0
        %v678 = vperm.slane %v390, 0
        %v679 = vperm.slane %v391, 0
        %680 = vset.pattern.permute.xlu0 0
        %681 = vperm.xlu0 %680, %v392
        %v682 = vpop.permute.xlu0 %681
        %684 = vset.pattern.permute.xlu0 0
        %685 = vperm.xlu0 %684, %v393
        %v686 = vpop.permute.xlu0 %685
        %688 = vset.pattern.permute.xlu0 0
        %689 = vperm.xlu0 %688, %v394
        %v690 = vpop.permute.xlu0 %689
        %692 = vset.pattern.permute.xlu0 0
        %693 = vperm.xlu0 %692, %v395
        %v694 = vpop.permute.xlu0 %693
        %696 = vset.pattern.permute.xlu0 0
        %697 = vperm.xlu0 %696, %v396
        %v698 = vpop.permute.xlu0 %697
        %700 = vset.pattern.permute.xlu0 0
        %701 = vperm.xlu0 %700, %v397
        %v702 = vpop.permute.xlu0 %701
        %704 = vset.pattern.permute.xlu0 0
        %705 = vperm.xlu0 %704, %v398
        %v706 = vpop.permute.xlu0 %705
        %708 = vset.pattern.permute.xlu0 0
        %709 = vperm.xlu0 %708, %v399
        %v710 = vpop.permute.xlu0 %709
        %712 = vset.pattern.permute.xlu0 0
        %713 = vperm.xlu0 %712, %v400
        %v714 = vpop.permute.xlu0 %713
        %716 = vset.pattern.permute.xlu0 0
        %717 = vperm.xlu0 %716, %v401
        %v718 = vpop.permute.xlu0 %717
        %720 = vset.pattern.permute.xlu0 0
        %721 = vperm.xlu0 %720, %v402
        %v722 = vpop.permute.xlu0 %721
        %724 = vset.pattern.permute.xlu0 0
        %725 = vperm.xlu0 %724, %v403
        %v726 = vpop.permute.xlu0 %725
        %728 = vset.pattern.permute.xlu0 0
        %729 = vperm.xlu0 %728, %v404
        %v730 = vpop.permute.xlu0 %729
        %732 = vset.pattern.permute.xlu0 0
        %733 = vperm.xlu0 %732, %v405
        %v734 = vpop.permute.xlu0 %733
        %736 = vset.pattern.permute.xlu0 0
        %737 = vperm.xlu0 %736, %v406
        %v738 = vpop.permute.xlu0 %737
        %740 = vset.pattern.permute.xlu0 0
        %741 = vperm.xlu0 %740, %v407
        %v742 = vpop.permute.xlu0 %741
        %744 = vset.pattern.permute.xlu0 0
        %745 = vperm.xlu0 %744, %v408
        %v746 = vpop.permute.xlu0 %745
        %748 = vset.pattern.permute.xlu0 0
        %749 = vperm.xlu0 %748, %v409
        %v750 = vpop.permute.xlu0 %749
        %752 = vset.pattern.permute.xlu0 0
        %753 = vperm.xlu0 %752, %v410
        %v754 = vpop.permute.xlu0 %753
        %756 = vset.pattern.permute.xlu0 0
        %757 = vperm.xlu0 %756, %v411
        %v758 = vpop.permute.xlu0 %757
        %760 = vset.pattern.permute.xlu0 0
        %761 = vperm.xlu0 %760, %v412
        %v762 = vpop.permute.xlu0 %761
        %764 = vset.pattern.permute.xlu0 0
        %765 = vperm.xlu0 %764, %v413
        %v766 = vpop.permute.xlu0 %765
        %768 = vset.pattern.permute.xlu0 0
        %769 = vperm.xlu0 %768, %v414
        %v770 = vpop.permute.xlu0 %769
        %772 = vset.pattern.permute.xlu0 0
        %773 = vperm.xlu0 %772, %v415
        %v774 = vpop.permute.xlu0 %773
        %776 = vset.pattern.permute.xlu0 0
        %777 = vperm.xlu0 %776, %v416
        %v778 = vpop.permute.xlu0 %777
        %780 = vset.pattern.permute.xlu0 0
        %781 = vperm.xlu0 %780, %v417
        %v782 = vpop.permute.xlu0 %781
        %784 = vset.pattern.permute.xlu0 0
        %785 = vperm.xlu0 %784, %v418
        %v786 = vpop.permute.xlu0 %785
        %788 = vset.pattern.permute.xlu0 0
        %789 = vperm.xlu0 %788, %v419
        %v790 = vpop.permute.xlu0 %789
        %792 = vset.pattern.permute.xlu0 0
        %793 = vperm.xlu0 %792, %v420
        %v794 = vpop.permute.xlu0 %793
        %796 = vset.pattern.permute.xlu0 0
        %797 = vperm.xlu0 %796, %v421
        %v798 = vpop.permute.xlu0 %797
        %800 = vset.pattern.permute.xlu0 0
        %801 = vperm.xlu0 %800, %v422
        %v802 = vpop.permute.xlu0 %801
        %804 = vset.pattern.permute.xlu0 0
        %805 = vperm.xlu0 %804, %v423
        %v806 = vpop.permute.xlu0 %805
        %v808 = vmul.f32 %v648, %v682
        %v809 = vmul.f32 %v649, %v686
        %v810 = vmul.f32 %v650, %v690
        %v811 = vmul.f32 %v651, %v694
        %v812 = vmul.f32 %v652, %v698
        %v813 = vmul.f32 %v653, %v702
        %v814 = vmul.f32 %v654, %v706
        %v815 = vmul.f32 %v655, %v710
        %v816 = vmul.f32 %v656, %v714
        %v817 = vmul.f32 %v657, %v718
        %v818 = vmul.f32 %v658, %v722
        %v819 = vmul.f32 %v659, %v726
        %v820 = vmul.f32 %v660, %v730
        %v821 = vmul.f32 %v661, %v734
        %v822 = vmul.f32 %v662, %v738
        %v823 = vmul.f32 %v663, %v742
        %v824 = vmul.f32 %v664, %v746
        %v825 = vmul.f32 %v665, %v750
        %v826 = vmul.f32 %v666, %v754
        %v827 = vmul.f32 %v667, %v758
        %v828 = vmul.f32 %v668, %v762
        %v829 = vmul.f32 %v669, %v766
        %v830 = vmul.f32 %v670, %v770
        %v831 = vmul.f32 %v671, %v774
        %v832 = vmul.f32 %v672, %v778
        %v833 = vmul.f32 %v673, %v782
        %v834 = vmul.f32 %v674, %v786
        %v835 = vmul.f32 %v675, %v790
        %v836 = vmul.f32 %v676, %v794
        %v837 = vmul.f32 %v677, %v798
        %v838 = vmul.f32 %v678, %v802
        %v839 = vmul.f32 %v679, %v806
        %v840 = vadd.f32 %v616, %v808
        %v841 = vadd.f32 %v617, %v809
        %v842 = vadd.f32 %v618, %v810
        %v843 = vadd.f32 %v619, %v811
        %v844 = vadd.f32 %v620, %v812
        %v845 = vadd.f32 %v621, %v813
        %v846 = vadd.f32 %v622, %v814
        %v847 = vadd.f32 %v623, %v815
        %v848 = vadd.f32 %v624, %v816
        %v849 = vadd.f32 %v625, %v817
        %v850 = vadd.f32 %v626, %v818
        %v851 = vadd.f32 %v627, %v819
        %v852 = vadd.f32 %v628, %v820
        %v853 = vadd.f32 %v629, %v821
        %v854 = vadd.f32 %v630, %v822
        %v855 = vadd.f32 %v631, %v823
        %v856 = vadd.f32 %v632, %v824
        %v857 = vadd.f32 %v633, %v825
        %v858 = vadd.f32 %v634, %v826
        %v859 = vadd.f32 %v635, %v827
        %v860 = vadd.f32 %v636, %v828
        %v861 = vadd.f32 %v637, %v829
        %v862 = vadd.f32 %v638, %v830
        %v863 = vadd.f32 %v639, %v831
        %v864 = vadd.f32 %v640, %v832
        %v865 = vadd.f32 %v641, %v833
        %v866 = vadd.f32 %v642, %v834
        %v867 = vadd.f32 %v643, %v835
        %v868 = vadd.f32 %v644, %v836
        %v869 = vadd.f32 %v645, %v837
        %v870 = vadd.f32 %v646, %v838
        %v871 = vadd.f32 %v647, %v839
        %vm872 = vcmask 130048
        %873 = vst.msk [vmem:[%s323] sm:$0xff] %vm872, %v840
        %874 = vst.msk [vmem:[%s323 + $0x8] sm:$0xff] %vm872, %v841
        %875 = vst.msk [vmem:[%s323 + $0x10] sm:$0xff] %vm872, %v842
        %876 = vst.msk [vmem:[%s323 + $0x18] sm:$0xff] %vm872, %v843
        %877 = vst.msk [vmem:[%s323 + $0x20] sm:$0xff] %vm872, %v844
        %878 = vst.msk [vmem:[%s323 + $0x28] sm:$0xff] %vm872, %v845
        %879 = vst.msk [vmem:[%s323 + $0x30] sm:$0xff] %vm872, %v846
        %880 = vst.msk [vmem:[%s323 + $0x38] sm:$0xff] %vm872, %v847
        %881 = vst.msk [vmem:[%s323 + $0x40] sm:$0xff] %vm872, %v848
        %882 = vst.msk [vmem:[%s323 + $0x48] sm:$0xff] %vm872, %v849
        %883 = vst.msk [vmem:[%s323 + $0x50] sm:$0xff] %vm872, %v850
        %884 = vst.msk [vmem:[%s323 + $0x58] sm:$0xff] %vm872, %v851
        %885 = vst.msk [vmem:[%s323 + $0x60] sm:$0xff] %vm872, %v852
        %886 = vst.msk [vmem:[%s323 + $0x68] sm:$0xff] %vm872, %v853
        %887 = vst.msk [vmem:[%s323 + $0x70] sm:$0xff] %vm872, %v854
        %888 = vst.msk [vmem:[%s323 + $0x78] sm:$0xff] %vm872, %v855
        %889 = vst.msk [vmem:[%s323 + $0x80] sm:$0xff] %vm872, %v856
        %890 = vst.msk [vmem:[%s323 + $0x88] sm:$0xff] %vm872, %v857
        %891 = vst.msk [vmem:[%s323 + $0x90] sm:$0xff] %vm872, %v858
        %892 = vst.msk [vmem:[%s323 + $0x98] sm:$0xff] %vm872, %v859
        %893 = vst.msk [vmem:[%s323 + $0xa0] sm:$0xff] %vm872, %v860
        %894 = vst.msk [vmem:[%s323 + $0xa8] sm:$0xff] %vm872, %v861
        %895 = vst.msk [vmem:[%s323 + $0xb0] sm:$0xff] %vm872, %v862
        %896 = vst.msk [vmem:[%s323 + $0xb8] sm:$0xff] %vm872, %v863
        %897 = vst.msk [vmem:[%s323 + $0xc0] sm:$0xff] %vm872, %v864
        %898 = vst.msk [vmem:[%s323 + $0xc8] sm:$0xff] %vm872, %v865
        %899 = vst.msk [vmem:[%s323 + $0xd0] sm:$0xff] %vm872, %v866
        %900 = vst.msk [vmem:[%s323 + $0xd8] sm:$0xff] %vm872, %v867
        %901 = vst.msk [vmem:[%s323 + $0xe0] sm:$0xff] %vm872, %v868
        %902 = vst.msk [vmem:[%s323 + $0xe8] sm:$0xff] %vm872, %v869
        %903 = vst.msk [vmem:[%s323 + $0xf0] sm:$0xff] %vm872, %v870
        %904 = vst.msk [vmem:[%s323 + $0xf8] sm:$0xff] %vm872, %v871
        %v905 = vmul.f32 %v648, %v459
        %v906 = vmul.f32 %v649, %v464
        %v907 = vmul.f32 %v650, %v469
        %v908 = vmul.f32 %v651, %v474
        %v909 = vmul.f32 %v652, %v479
        %v910 = vmul.f32 %v653, %v484
        %v911 = vmul.f32 %v654, %v489
        %v912 = vmul.f32 %v655, %v494
        %v913 = vmul.f32 %v656, %v499
        %v914 = vmul.f32 %v657, %v504
        %v915 = vmul.f32 %v658, %v509
        %v916 = vmul.f32 %v659, %v514
        %v917 = vmul.f32 %v660, %v519
        %v918 = vmul.f32 %v661, %v524
        %v919 = vmul.f32 %v662, %v529
        %v920 = vmul.f32 %v663, %v534
        %v921 = vmul.f32 %v664, %v539
        %v922 = vmul.f32 %v665, %v544
        %v923 = vmul.f32 %v666, %v549
        %v924 = vmul.f32 %v667, %v554
        %v925 = vmul.f32 %v668, %v559
        %v926 = vmul.f32 %v669, %v564
        %v927 = vmul.f32 %v670, %v569
        %v928 = vmul.f32 %v671, %v574
        %v929 = vmul.f32 %v672, %v579
        %v930 = vmul.f32 %v673, %v584
        %v931 = vmul.f32 %v674, %v589
        %v932 = vmul.f32 %v675, %v594
        %v933 = vmul.f32 %v676, %v599
        %v934 = vmul.f32 %v677, %v604
        %v935 = vmul.f32 %v678, %v609
        %v936 = vmul.f32 %v679, %v614
        %v937 = vmul.f32 %v424, %v682
        %v938 = vmul.f32 %v425, %v686
        %v939 = vmul.f32 %v426, %v690
        %v940 = vmul.f32 %v427, %v694
        %v941 = vmul.f32 %v428, %v698
        %v942 = vmul.f32 %v429, %v702
        %v943 = vmul.f32 %v430, %v706
        %v944 = vmul.f32 %v431, %v710
        %v945 = vmul.f32 %v432, %v714
        %v946 = vmul.f32 %v433, %v718
        %v947 = vmul.f32 %v434, %v722
        %v948 = vmul.f32 %v435, %v726
        %v949 = vmul.f32 %v436, %v730
        %v950 = vmul.f32 %v437, %v734
        %v951 = vmul.f32 %v438, %v738
        %v952 = vmul.f32 %v439, %v742
        %v953 = vmul.f32 %v440, %v746
        %v954 = vmul.f32 %v441, %v750
        %v955 = vmul.f32 %v442, %v754
        %v956 = vmul.f32 %v443, %v758
        %v957 = vmul.f32 %v444, %v762
        %v958 = vmul.f32 %v445, %v766
        %v959 = vmul.f32 %v446, %v770
        %v960 = vmul.f32 %v447, %v774
        %v961 = vmul.f32 %v448, %v778
        %v962 = vmul.f32 %v449, %v782
        %v963 = vmul.f32 %v450, %v786
        %v964 = vmul.f32 %v451, %v790
        %v965 = vmul.f32 %v452, %v794
        %v966 = vmul.f32 %v453, %v798
        %v967 = vmul.f32 %v454, %v802
        %v968 = vmul.f32 %v455, %v806
        %v969 = vsub.f32 %v905, %v937
        %v970 = vsub.f32 %v906, %v938
        %v971 = vsub.f32 %v907, %v939
        %v972 = vsub.f32 %v908, %v940
        %v973 = vsub.f32 %v909, %v941
        %v974 = vsub.f32 %v910, %v942
        %v975 = vsub.f32 %v911, %v943
        %v976 = vsub.f32 %v912, %v944
        %v977 = vsub.f32 %v913, %v945
        %v978 = vsub.f32 %v914, %v946
        %v979 = vsub.f32 %v915, %v947
        %v980 = vsub.f32 %v916, %v948
        %v981 = vsub.f32 %v917, %v949
        %v982 = vsub.f32 %v918, %v950
        %v983 = vsub.f32 %v919, %v951
        %v984 = vsub.f32 %v920, %v952
        %v985 = vsub.f32 %v921, %v953
        %v986 = vsub.f32 %v922, %v954
        %v987 = vsub.f32 %v923, %v955
        %v988 = vsub.f32 %v924, %v956
        %v989 = vsub.f32 %v925, %v957
        %v990 = vsub.f32 %v926, %v958
        %v991 = vsub.f32 %v927, %v959
        %v992 = vsub.f32 %v928, %v960
        %v993 = vsub.f32 %v929, %v961
        %v994 = vsub.f32 %v930, %v962
        %v995 = vsub.f32 %v931, %v963
        %v996 = vsub.f32 %v932, %v964
        %v997 = vsub.f32 %v933, %v965
        %v998 = vsub.f32 %v934, %v966
        %v999 = vsub.f32 %v935, %v967
        %v1000 = vsub.f32 %v936, %v968
        %s1001 = scalar_lea.vmem %s323, 256 [#allocation3]
        %1002 = vst.msk [vmem:[%s1001] sm:$0xff] %vm872, %v969
        %1003 = vst.msk [vmem:[%s1001 + $0x8] sm:$0xff] %vm872, %v970
        %1004 = vst.msk [vmem:[%s1001 + $0x10] sm:$0xff] %vm872, %v971
        %1005 = vst.msk [vmem:[%s1001 + $0x18] sm:$0xff] %vm872, %v972
        %1006 = vst.msk [vmem:[%s1001 + $0x20] sm:$0xff] %vm872, %v973
        %1007 = vst.msk [vmem:[%s1001 + $0x28] sm:$0xff] %vm872, %v974
        %1008 = vst.msk [vmem:[%s1001 + $0x30] sm:$0xff] %vm872, %v975
        %1009 = vst.msk [vmem:[%s1001 + $0x38] sm:$0xff] %vm872, %v976
        %1010 = vst.msk [vmem:[%s1001 + $0x40] sm:$0xff] %vm872, %v977
        %1011 = vst.msk [vmem:[%s1001 + $0x48] sm:$0xff] %vm872, %v978
        %1012 = vst.msk [vmem:[%s1001 + $0x50] sm:$0xff] %vm872, %v979
        %1013 = vst.msk [vmem:[%s1001 + $0x58] sm:$0xff] %vm872, %v980
        %1014 = vst.msk [vmem:[%s1001 + $0x60] sm:$0xff] %vm872, %v981
        %1015 = vst.msk [vmem:[%s1001 + $0x68] sm:$0xff] %vm872, %v982
        %1016 = vst.msk [vmem:[%s1001 + $0x70] sm:$0xff] %vm872, %v983
        %1017 = vst.msk [vmem:[%s1001 + $0x78] sm:$0xff] %vm872, %v984
        %1018 = vst.msk [vmem:[%s1001 + $0x80] sm:$0xff] %vm872, %v985
        %1019 = vst.msk [vmem:[%s1001 + $0x88] sm:$0xff] %vm872, %v986
        %1020 = vst.msk [vmem:[%s1001 + $0x90] sm:$0xff] %vm872, %v987
        %1021 = vst.msk [vmem:[%s1001 + $0x98] sm:$0xff] %vm872, %v988
        %1022 = vst.msk [vmem:[%s1001 + $0xa0] sm:$0xff] %vm872, %v989
        %1023 = vst.msk [vmem:[%s1001 + $0xa8] sm:$0xff] %vm872, %v990
        %1024 = vst.msk [vmem:[%s1001 + $0xb0] sm:$0xff] %vm872, %v991
        %1025 = vst.msk [vmem:[%s1001 + $0xb8] sm:$0xff] %vm872, %v992
        %1026 = vst.msk [vmem:[%s1001 + $0xc0] sm:$0xff] %vm872, %v993
        %1027 = vst.msk [vmem:[%s1001 + $0xc8] sm:$0xff] %vm872, %v994
        %1028 = vst.msk [vmem:[%s1001 + $0xd0] sm:$0xff] %vm872, %v995
        %1029 = vst.msk [vmem:[%s1001 + $0xd8] sm:$0xff] %vm872, %v996
        %1030 = vst.msk [vmem:[%s1001 + $0xe0] sm:$0xff] %vm872, %v997
        %1031 = vst.msk [vmem:[%s1001 + $0xe8] sm:$0xff] %vm872, %v998
        %1032 = vst.msk [vmem:[%s1001 + $0xf0] sm:$0xff] %vm872, %v999
        %1033 = vst.msk [vmem:[%s1001 + $0xf8] sm:$0xff] %vm872, %v1000
        %s1034 = sand.u32 %s87, 1
        %s1035 = sand.u32 %s87, 1
        %s1036 = smul.addr %s1035, 512
        %s1037 = scalar_lea.vmem [#allocation3], %s1036
        // Predicated region
        $region67: #{tpu_custom_call.1} parent=61 // pred_check
          %p1038 = pneg %p97
        $region68: #{tpu_custom_call.1} parent=61 // pred_check_branch
          %1040 = sbr.rel (%p1038) target = $region70
        $region69: #{tpu_custom_call.1} parent=61 // pred_region
          %s1041 = sadd.s32 %s18, %s17
          %s1042 = smul.addr %s1041, 8
          %s1043 = scalar_lea.vmem %s2, %s1042
          // Predicated region
          $region71: #{tpu_custom_call.1} parent=69 // pred_check
            _
          $region72: #{tpu_custom_call.1} parent=69 // pred_check_branch
            %1045 = sbr.rel (0) target = $region74
          $region73: #{tpu_custom_call.1} parent=69 // pred_region
            // Predicated region
            $region75: #{tpu_custom_call.1} parent=73 // pred_check
              _
            $region76: #{tpu_custom_call.1} parent=73 // pred_check_branch
              %1047 = sbr.rel (0) target = $region78
            $region77: #{tpu_custom_call.1} parent=73 // pred_region
              // Predicated region
              $region90: #{tpu_custom_call.1} parent=77 // pred_check
                _
              $region91: #{tpu_custom_call.1} parent=77 // pred_check_branch
                %1189 = sbr.rel (0) target = $region93
              $region92: #{tpu_custom_call.1} parent=77 // pred_region
                loop: start=0, step=1, limit=1
                $region94: #{tpu_custom_call.1} parent=92 // loop_pre_header
                  _
                $region95: #{tpu_custom_call.1} parent=92 // loop_header
                  %s1191 = sphi 0, %s1195
                  %p1192 = scmp.ge.s32.totalorder %s1191, 1
                  %s1196 = sphi %s1037, %s1037
                  %s1197 = sphi %s1043, %s1043
                $region96: #{tpu_custom_call.1} parent=92 // loop_header_branch
                  %1194 = sbr.rel (%p1192) target = $region100
                $region97: #{tpu_custom_call.1} parent=92 // loop_body
                  %v1198 = vld [vmem:[%s1196] sm:$0xff]
                  %1199 = vst [vmem:[%s1197] sm:$0xff] %v1198
                  %v1200 = vld [vmem:[%s1196 + $0x8] sm:$0xff]
                  %1201 = vst [vmem:[%s1197 + $0x10] sm:$0xff] %v1200
                  %v1202 = vld [vmem:[%s1196 + $0x10] sm:$0xff]
                  %1203 = vst [vmem:[%s1197 + $0x20] sm:$0xff] %v1202
                  %v1204 = vld [vmem:[%s1196 + $0x18] sm:$0xff]
                  %1205 = vst [vmem:[%s1197 + $0x30] sm:$0xff] %v1204
                  %v1206 = vld [vmem:[%s1196 + $0x20] sm:$0xff]
                  %1207 = vst [vmem:[%s1197 + $0x40] sm:$0xff] %v1206
                  %v1208 = vld [vmem:[%s1196 + $0x28] sm:$0xff]
                  %1209 = vst [vmem:[%s1197 + $0x50] sm:$0xff] %v1208
                  %v1210 = vld [vmem:[%s1196 + $0x30] sm:$0xff]
                  %1211 = vst [vmem:[%s1197 + $0x60] sm:$0xff] %v1210
                  %v1212 = vld [vmem:[%s1196 + $0x38] sm:$0xff]
                  %1213 = vst [vmem:[%s1197 + $0x70] sm:$0xff] %v1212
                  %v1214 = vld [vmem:[%s1196 + $0x40] sm:$0xff]
                  %1215 = vst [vmem:[%s1197 + $0x80] sm:$0xff] %v1214
                  %v1216 = vld [vmem:[%s1196 + $0x48] sm:$0xff]
                  %1217 = vst [vmem:[%s1197 + $0x90] sm:$0xff] %v1216
                  %v1218 = vld [vmem:[%s1196 + $0x50] sm:$0xff]
                  %1219 = vst [vmem:[%s1197 + $0xa0] sm:$0xff] %v1218
                  %v1220 = vld [vmem:[%s1196 + $0x58] sm:$0xff]
                  %1221 = vst [vmem:[%s1197 + $0xb0] sm:$0xff] %v1220
                  %v1222 = vld [vmem:[%s1196 + $0x60] sm:$0xff]
                  %1223 = vst [vmem:[%s1197 + $0xc0] sm:$0xff] %v1222
                  %v1224 = vld [vmem:[%s1196 + $0x68] sm:$0xff]
                  %1225 = vst [vmem:[%s1197 + $0xd0] sm:$0xff] %v1224
                  %v1226 = vld [vmem:[%s1196 + $0x70] sm:$0xff]
                  %1227 = vst [vmem:[%s1197 + $0xe0] sm:$0xff] %v1226
                  %v1228 = vld [vmem:[%s1196 + $0x78] sm:$0xff]
                  %1229 = vst [vmem:[%s1197 + $0xf0] sm:$0xff] %v1228
                  %v1230 = vld [vmem:[%s1196 + $0x80] sm:$0xff]
                  %1231 = vst [vmem:[%s1197 + $0x100] sm:$0xff] %v1230
                  %v1232 = vld [vmem:[%s1196 + $0x88] sm:$0xff]
                  %1233 = vst [vmem:[%s1197 + $0x110] sm:$0xff] %v1232
                  %v1234 = vld [vmem:[%s1196 + $0x90] sm:$0xff]
                  %1235 = vst [vmem:[%s1197 + $0x120] sm:$0xff] %v1234
                  %v1236 = vld [vmem:[%s1196 + $0x98] sm:$0xff]
                  %1237 = vst [vmem:[%s1197 + $0x130] sm:$0xff] %v1236
                  %v1238 = vld [vmem:[%s1196 + $0xa0] sm:$0xff]
                  %1239 = vst [vmem:[%s1197 + $0x140] sm:$0xff] %v1238
                  %v1240 = vld [vmem:[%s1196 + $0xa8] sm:$0xff]
                  %1241 = vst [vmem:[%s1197 + $0x150] sm:$0xff] %v1240
                  %v1242 = vld [vmem:[%s1196 + $0xb0] sm:$0xff]
                  %1243 = vst [vmem:[%s1197 + $0x160] sm:$0xff] %v1242
                  %v1244 = vld [vmem:[%s1196 + $0xb8] sm:$0xff]
                  %1245 = vst [vmem:[%s1197 + $0x170] sm:$0xff] %v1244
                  %v1246 = vld [vmem:[%s1196 + $0xc0] sm:$0xff]
                  %1247 = vst [vmem:[%s1197 + $0x180] sm:$0xff] %v1246
                  %v1248 = vld [vmem:[%s1196 + $0xc8] sm:$0xff]
                  %1249 = vst [vmem:[%s1197 + $0x190] sm:$0xff] %v1248
                  %v1250 = vld [vmem:[%s1196 + $0xd0] sm:$0xff]
                  %1251 = vst [vmem:[%s1197 + $0x1a0] sm:$0xff] %v1250
                  %v1252 = vld [vmem:[%s1196 + $0xd8] sm:$0xff]
                  %1253 = vst [vmem:[%s1197 + $0x1b0] sm:$0xff] %v1252
                  %v1254 = vld [vmem:[%s1196 + $0xe0] sm:$0xff]
                  %1255 = vst [vmem:[%s1197 + $0x1c0] sm:$0xff] %v1254
                  %v1256 = vld [vmem:[%s1196 + $0xe8] sm:$0xff]
                  %1257 = vst [vmem:[%s1197 + $0x1d0] sm:$0xff] %v1256
                  %v1258 = vld [vmem:[%s1196 + $0xf0] sm:$0xff]
                  %1259 = vst [vmem:[%s1197 + $0x1e0] sm:$0xff] %v1258
                  %v1260 = vld [vmem:[%s1196 + $0xf8] sm:$0xff]
                  %1261 = vst [vmem:[%s1197 + $0x1f0] sm:$0xff] %v1260
                  %v1262 = vld [vmem:[%s1196 + $0x100] sm:$0xff]
                  %1263 = vst [vmem:[%s1197 + $0x200] sm:$0xff] %v1262
                  %v1264 = vld [vmem:[%s1196 + $0x108] sm:$0xff]
                  %1265 = vst [vmem:[%s1197 + $0x210] sm:$0xff] %v1264
                  %v1266 = vld [vmem:[%s1196 + $0x110] sm:$0xff]
                  %1267 = vst [vmem:[%s1197 + $0x220] sm:$0xff] %v1266
                  %v1268 = vld [vmem:[%s1196 + $0x118] sm:$0xff]
                  %1269 = vst [vmem:[%s1197 + $0x230] sm:$0xff] %v1268
                  %v1270 = vld [vmem:[%s1196 + $0x120] sm:$0xff]
                  %1271 = vst [vmem:[%s1197 + $0x240] sm:$0xff] %v1270
                  %v1272 = vld [vmem:[%s1196 + $0x128] sm:$0xff]
                  %1273 = vst [vmem:[%s1197 + $0x250] sm:$0xff] %v1272
                  %v1274 = vld [vmem:[%s1196 + $0x130] sm:$0xff]
                  %1275 = vst [vmem:[%s1197 + $0x260] sm:$0xff] %v1274
                  %v1276 = vld [vmem:[%s1196 + $0x138] sm:$0xff]
                  %1277 = vst [vmem:[%s1197 + $0x270] sm:$0xff] %v1276
                  %v1278 = vld [vmem:[%s1196 + $0x140] sm:$0xff]
                  %1279 = vst [vmem:[%s1197 + $0x280] sm:$0xff] %v1278
                  %v1280 = vld [vmem:[%s1196 + $0x148] sm:$0xff]
                  %1281 = vst [vmem:[%s1197 + $0x290] sm:$0xff] %v1280
                  %v1282 = vld [vmem:[%s1196 + $0x150] sm:$0xff]
                  %1283 = vst [vmem:[%s1197 + $0x2a0] sm:$0xff] %v1282
                  %v1284 = vld [vmem:[%s1196 + $0x158] sm:$0xff]
                  %1285 = vst [vmem:[%s1197 + $0x2b0] sm:$0xff] %v1284
                  %v1286 = vld [vmem:[%s1196 + $0x160] sm:$0xff]
                  %1287 = vst [vmem:[%s1197 + $0x2c0] sm:$0xff] %v1286
                  %v1288 = vld [vmem:[%s1196 + $0x168] sm:$0xff]
                  %1289 = vst [vmem:[%s1197 + $0x2d0] sm:$0xff] %v1288
                  %v1290 = vld [vmem:[%s1196 + $0x170] sm:$0xff]
                  %1291 = vst [vmem:[%s1197 + $0x2e0] sm:$0xff] %v1290
                  %v1292 = vld [vmem:[%s1196 + $0x178] sm:$0xff]
                  %1293 = vst [vmem:[%s1197 + $0x2f0] sm:$0xff] %v1292
                  %v1294 = vld [vmem:[%s1196 + $0x180] sm:$0xff]
                  %1295 = vst [vmem:[%s1197 + $0x300] sm:$0xff] %v1294
                  %v1296 = vld [vmem:[%s1196 + $0x188] sm:$0xff]
                  %1297 = vst [vmem:[%s1197 + $0x310] sm:$0xff] %v1296
                  %v1298 = vld [vmem:[%s1196 + $0x190] sm:$0xff]
                  %1299 = vst [vmem:[%s1197 + $0x320] sm:$0xff] %v1298
                  %v1300 = vld [vmem:[%s1196 + $0x198] sm:$0xff]
                  %1301 = vst [vmem:[%s1197 + $0x330] sm:$0xff] %v1300
                  %v1302 = vld [vmem:[%s1196 + $0x1a0] sm:$0xff]
                  %1303 = vst [vmem:[%s1197 + $0x340] sm:$0xff] %v1302
                  %v1304 = vld [vmem:[%s1196 + $0x1a8] sm:$0xff]
                  %1305 = vst [vmem:[%s1197 + $0x350] sm:$0xff] %v1304
                  %v1306 = vld [vmem:[%s1196 + $0x1b0] sm:$0xff]
                  %1307 = vst [vmem:[%s1197 + $0x360] sm:$0xff] %v1306
                  %v1308 = vld [vmem:[%s1196 + $0x1b8] sm:$0xff]
                  %1309 = vst [vmem:[%s1197 + $0x370] sm:$0xff] %v1308
                  %v1310 = vld [vmem:[%s1196 + $0x1c0] sm:$0xff]
                  %1311 = vst [vmem:[%s1197 + $0x380] sm:$0xff] %v1310
                  %v1312 = vld [vmem:[%s1196 + $0x1c8] sm:$0xff]
                  %1313 = vst [vmem:[%s1197 + $0x390] sm:$0xff] %v1312
                  %v1314 = vld [vmem:[%s1196 + $0x1d0] sm:$0xff]
                  %1315 = vst [vmem:[%s1197 + $0x3a0] sm:$0xff] %v1314
                  %v1316 = vld [vmem:[%s1196 + $0x1d8] sm:$0xff]
                  %1317 = vst [vmem:[%s1197 + $0x3b0] sm:$0xff] %v1316
                  %v1318 = vld [vmem:[%s1196 + $0x1e0] sm:$0xff]
                  %1319 = vst [vmem:[%s1197 + $0x3c0] sm:$0xff] %v1318
                  %v1320 = vld [vmem:[%s1196 + $0x1e8] sm:$0xff]
                  %1321 = vst [vmem:[%s1197 + $0x3d0] sm:$0xff] %v1320
                  %v1322 = vld [vmem:[%s1196 + $0x1f0] sm:$0xff]
                  %1323 = vst [vmem:[%s1197 + $0x3e0] sm:$0xff] %v1322
                  %v1324 = vld [vmem:[%s1196 + $0x1f8] sm:$0xff]
                  %1325 = vst [vmem:[%s1197 + $0x3f0] sm:$0xff] %v1324
                $region98: #{tpu_custom_call.1} parent=92 // loop_footer
                  %s1195 = sadd.s32 1, %s1191
                $region99: #{tpu_custom_call.1} parent=92 // loop_footer_branch
                  %1190 = sbr.rel target = $region95
                $region100: #{tpu_custom_call.1} parent=92 // loop_exit
                  _
              $region93: #{tpu_custom_call.1} parent=77 // pred_fallthru
                _
              // Predicated region
              $region101: #{tpu_custom_call.1} parent=77 // pred_check
                _
              $region102: #{tpu_custom_call.1} parent=77 // pred_check_branch
                %1327 = sbr.rel target = $region104
              $region103: #{tpu_custom_call.1} parent=77 // pred_region
                _
              $region104: #{tpu_custom_call.1} parent=77 // pred_fallthru
                _
            $region78: #{tpu_custom_call.1} parent=73 // pred_fallthru
              _
            // Predicated region
            $region79: #{tpu_custom_call.1} parent=73 // pred_check
              _
            $region80: #{tpu_custom_call.1} parent=73 // pred_check_branch
              %1049 = sbr.rel target = $region82
            $region81: #{tpu_custom_call.1} parent=73 // pred_region
              %s1051 = ssub.s32 256, 1
              loop: start=0, step=1, limit=1
              $region83: #{tpu_custom_call.1} parent=81 // loop_pre_header
                _
              $region84: #{tpu_custom_call.1} parent=81 // loop_header
                %s1053 = sphi 0, %s1057
                %p1054 = scmp.ge.s32.totalorder %s1053, 1
                %s1058 = sphi %s1037, %s1037
                %s1059 = sphi %s1043, %s1043
              $region85: #{tpu_custom_call.1} parent=81 // loop_header_branch
                %1056 = sbr.rel (%p1054) target = $region89
              $region86: #{tpu_custom_call.1} parent=81 // loop_body
                %v1060 = vld [vmem:[%s1058] sm:%s1051]
                %1061 = vst [vmem:[%s1059] sm:%s1051] %v1060
                %v1062 = vld [vmem:[%s1058 + $0x8] sm:%s1051]
                %1063 = vst [vmem:[%s1059 + $0x10] sm:%s1051] %v1062
                %v1064 = vld [vmem:[%s1058 + $0x10] sm:%s1051]
                %1065 = vst [vmem:[%s1059 + $0x20] sm:%s1051] %v1064
                %v1066 = vld [vmem:[%s1058 + $0x18] sm:%s1051]
                %1067 = vst [vmem:[%s1059 + $0x30] sm:%s1051] %v1066
                %v1068 = vld [vmem:[%s1058 + $0x20] sm:%s1051]
                %1069 = vst [vmem:[%s1059 + $0x40] sm:%s1051] %v1068
                %v1070 = vld [vmem:[%s1058 + $0x28] sm:%s1051]
                %1071 = vst [vmem:[%s1059 + $0x50] sm:%s1051] %v1070
                %v1072 = vld [vmem:[%s1058 + $0x30] sm:%s1051]
                %1073 = vst [vmem:[%s1059 + $0x60] sm:%s1051] %v1072
                %v1074 = vld [vmem:[%s1058 + $0x38] sm:%s1051]
                %1075 = vst [vmem:[%s1059 + $0x70] sm:%s1051] %v1074
                %v1076 = vld [vmem:[%s1058 + $0x40] sm:%s1051]
                %1077 = vst [vmem:[%s1059 + $0x80] sm:%s1051] %v1076
                %v1078 = vld [vmem:[%s1058 + $0x48] sm:%s1051]
                %1079 = vst [vmem:[%s1059 + $0x90] sm:%s1051] %v1078
                %v1080 = vld [vmem:[%s1058 + $0x50] sm:%s1051]
                %1081 = vst [vmem:[%s1059 + $0xa0] sm:%s1051] %v1080
                %v1082 = vld [vmem:[%s1058 + $0x58] sm:%s1051]
                %1083 = vst [vmem:[%s1059 + $0xb0] sm:%s1051] %v1082
                %v1084 = vld [vmem:[%s1058 + $0x60] sm:%s1051]
                %1085 = vst [vmem:[%s1059 + $0xc0] sm:%s1051] %v1084
                %v1086 = vld [vmem:[%s1058 + $0x68] sm:%s1051]
                %1087 = vst [vmem:[%s1059 + $0xd0] sm:%s1051] %v1086
                %v1088 = vld [vmem:[%s1058 + $0x70] sm:%s1051]
                %1089 = vst [vmem:[%s1059 + $0xe0] sm:%s1051] %v1088
                %v1090 = vld [vmem:[%s1058 + $0x78] sm:%s1051]
                %1091 = vst [vmem:[%s1059 + $0xf0] sm:%s1051] %v1090
                %v1092 = vld [vmem:[%s1058 + $0x80] sm:%s1051]
                %1093 = vst [vmem:[%s1059 + $0x100] sm:%s1051] %v1092
                %v1094 = vld [vmem:[%s1058 + $0x88] sm:%s1051]
                %1095 = vst [vmem:[%s1059 + $0x110] sm:%s1051] %v1094
                %v1096 = vld [vmem:[%s1058 + $0x90] sm:%s1051]
                %1097 = vst [vmem:[%s1059 + $0x120] sm:%s1051] %v1096
                %v1098 = vld [vmem:[%s1058 + $0x98] sm:%s1051]
                %1099 = vst [vmem:[%s1059 + $0x130] sm:%s1051] %v1098
                %v1100 = vld [vmem:[%s1058 + $0xa0] sm:%s1051]
                %1101 = vst [vmem:[%s1059 + $0x140] sm:%s1051] %v1100
                %v1102 = vld [vmem:[%s1058 + $0xa8] sm:%s1051]
                %1103 = vst [vmem:[%s1059 + $0x150] sm:%s1051] %v1102
                %v1104 = vld [vmem:[%s1058 + $0xb0] sm:%s1051]
                %1105 = vst [vmem:[%s1059 + $0x160] sm:%s1051] %v1104
                %v1106 = vld [vmem:[%s1058 + $0xb8] sm:%s1051]
                %1107 = vst [vmem:[%s1059 + $0x170] sm:%s1051] %v1106
                %v1108 = vld [vmem:[%s1058 + $0xc0] sm:%s1051]
                %1109 = vst [vmem:[%s1059 + $0x180] sm:%s1051] %v1108
                %v1110 = vld [vmem:[%s1058 + $0xc8] sm:%s1051]
                %1111 = vst [vmem:[%s1059 + $0x190] sm:%s1051] %v1110
                %v1112 = vld [vmem:[%s1058 + $0xd0] sm:%s1051]
                %1113 = vst [vmem:[%s1059 + $0x1a0] sm:%s1051] %v1112
                %v1114 = vld [vmem:[%s1058 + $0xd8] sm:%s1051]
                %1115 = vst [vmem:[%s1059 + $0x1b0] sm:%s1051] %v1114
                %v1116 = vld [vmem:[%s1058 + $0xe0] sm:%s1051]
                %1117 = vst [vmem:[%s1059 + $0x1c0] sm:%s1051] %v1116
                %v1118 = vld [vmem:[%s1058 + $0xe8] sm:%s1051]
                %1119 = vst [vmem:[%s1059 + $0x1d0] sm:%s1051] %v1118
                %v1120 = vld [vmem:[%s1058 + $0xf0] sm:%s1051]
                %1121 = vst [vmem:[%s1059 + $0x1e0] sm:%s1051] %v1120
                %v1122 = vld [vmem:[%s1058 + $0xf8] sm:%s1051]
                %1123 = vst [vmem:[%s1059 + $0x1f0] sm:%s1051] %v1122
                %v1124 = vld [vmem:[%s1058 + $0x100] sm:%s1051]
                %1125 = vst [vmem:[%s1059 + $0x200] sm:%s1051] %v1124
                %v1126 = vld [vmem:[%s1058 + $0x108] sm:%s1051]
                %1127 = vst [vmem:[%s1059 + $0x210] sm:%s1051] %v1126
                %v1128 = vld [vmem:[%s1058 + $0x110] sm:%s1051]
                %1129 = vst [vmem:[%s1059 + $0x220] sm:%s1051] %v1128
                %v1130 = vld [vmem:[%s1058 + $0x118] sm:%s1051]
                %1131 = vst [vmem:[%s1059 + $0x230] sm:%s1051] %v1130
                %v1132 = vld [vmem:[%s1058 + $0x120] sm:%s1051]
                %1133 = vst [vmem:[%s1059 + $0x240] sm:%s1051] %v1132
                %v1134 = vld [vmem:[%s1058 + $0x128] sm:%s1051]
                %1135 = vst [vmem:[%s1059 + $0x250] sm:%s1051] %v1134
                %v1136 = vld [vmem:[%s1058 + $0x130] sm:%s1051]
                %1137 = vst [vmem:[%s1059 + $0x260] sm:%s1051] %v1136
                %v1138 = vld [vmem:[%s1058 + $0x138] sm:%s1051]
                %1139 = vst [vmem:[%s1059 + $0x270] sm:%s1051] %v1138
                %v1140 = vld [vmem:[%s1058 + $0x140] sm:%s1051]
                %1141 = vst [vmem:[%s1059 + $0x280] sm:%s1051] %v1140
                %v1142 = vld [vmem:[%s1058 + $0x148] sm:%s1051]
                %1143 = vst [vmem:[%s1059 + $0x290] sm:%s1051] %v1142
                %v1144 = vld [vmem:[%s1058 + $0x150] sm:%s1051]
                %1145 = vst [vmem:[%s1059 + $0x2a0] sm:%s1051] %v1144
                %v1146 = vld [vmem:[%s1058 + $0x158] sm:%s1051]
                %1147 = vst [vmem:[%s1059 + $0x2b0] sm:%s1051] %v1146
                %v1148 = vld [vmem:[%s1058 + $0x160] sm:%s1051]
                %1149 = vst [vmem:[%s1059 + $0x2c0] sm:%s1051] %v1148
                %v1150 = vld [vmem:[%s1058 + $0x168] sm:%s1051]
                %1151 = vst [vmem:[%s1059 + $0x2d0] sm:%s1051] %v1150
                %v1152 = vld [vmem:[%s1058 + $0x170] sm:%s1051]
                %1153 = vst [vmem:[%s1059 + $0x2e0] sm:%s1051] %v1152
                %v1154 = vld [vmem:[%s1058 + $0x178] sm:%s1051]
                %1155 = vst [vmem:[%s1059 + $0x2f0] sm:%s1051] %v1154
                %v1156 = vld [vmem:[%s1058 + $0x180] sm:%s1051]
                %1157 = vst [vmem:[%s1059 + $0x300] sm:%s1051] %v1156
                %v1158 = vld [vmem:[%s1058 + $0x188] sm:%s1051]
                %1159 = vst [vmem:[%s1059 + $0x310] sm:%s1051] %v1158
                %v1160 = vld [vmem:[%s1058 + $0x190] sm:%s1051]
                %1161 = vst [vmem:[%s1059 + $0x320] sm:%s1051] %v1160
                %v1162 = vld [vmem:[%s1058 + $0x198] sm:%s1051]
                %1163 = vst [vmem:[%s1059 + $0x330] sm:%s1051] %v1162
                %v1164 = vld [vmem:[%s1058 + $0x1a0] sm:%s1051]
                %1165 = vst [vmem:[%s1059 + $0x340] sm:%s1051] %v1164
                %v1166 = vld [vmem:[%s1058 + $0x1a8] sm:%s1051]
                %1167 = vst [vmem:[%s1059 + $0x350] sm:%s1051] %v1166
                %v1168 = vld [vmem:[%s1058 + $0x1b0] sm:%s1051]
                %1169 = vst [vmem:[%s1059 + $0x360] sm:%s1051] %v1168
                %v1170 = vld [vmem:[%s1058 + $0x1b8] sm:%s1051]
                %1171 = vst [vmem:[%s1059 + $0x370] sm:%s1051] %v1170
                %v1172 = vld [vmem:[%s1058 + $0x1c0] sm:%s1051]
                %1173 = vst [vmem:[%s1059 + $0x380] sm:%s1051] %v1172
                %v1174 = vld [vmem:[%s1058 + $0x1c8] sm:%s1051]
                %1175 = vst [vmem:[%s1059 + $0x390] sm:%s1051] %v1174
                %v1176 = vld [vmem:[%s1058 + $0x1d0] sm:%s1051]
                %1177 = vst [vmem:[%s1059 + $0x3a0] sm:%s1051] %v1176
                %v1178 = vld [vmem:[%s1058 + $0x1d8] sm:%s1051]
                %1179 = vst [vmem:[%s1059 + $0x3b0] sm:%s1051] %v1178
                %v1180 = vld [vmem:[%s1058 + $0x1e0] sm:%s1051]
                %1181 = vst [vmem:[%s1059 + $0x3c0] sm:%s1051] %v1180
                %v1182 = vld [vmem:[%s1058 + $0x1e8] sm:%s1051]
                %1183 = vst [vmem:[%s1059 + $0x3d0] sm:%s1051] %v1182
                %v1184 = vld [vmem:[%s1058 + $0x1f0] sm:%s1051]
                %1185 = vst [vmem:[%s1059 + $0x3e0] sm:%s1051] %v1184
                %v1186 = vld [vmem:[%s1058 + $0x1f8] sm:%s1051]
                %1187 = vst [vmem:[%s1059 + $0x3f0] sm:%s1051] %v1186
              $region87: #{tpu_custom_call.1} parent=81 // loop_footer
                %s1057 = sadd.s32 1, %s1053
              $region88: #{tpu_custom_call.1} parent=81 // loop_footer_branch
                %1052 = sbr.rel target = $region84
              $region89: #{tpu_custom_call.1} parent=81 // loop_exit
                _
            $region82: #{tpu_custom_call.1} parent=73 // pred_fallthru
              _
          $region74: #{tpu_custom_call.1} parent=69 // pred_fallthru
            _
          %1328 = vnop
        $region70: #{tpu_custom_call.1} parent=61 // pred_fallthru
          _
      $region62: #{tpu_custom_call.1} parent=5 // pred_fallthru
        _
      %p1329 = scmp.le.s32.totalorder 2, %s8
      // Predicated region
      $region105: #{tpu_custom_call.1} parent=5 // pred_check
        %p1330 = pneg %p1329
      $region106: #{tpu_custom_call.1} parent=5 // pred_check_branch
        %1332 = sbr.rel (%p1330) target = $region108
      $region107: #{tpu_custom_call.1} parent=5 // pred_region
        %s1333 = ssub.s32 %s8, 2
        // Predicated region
        $region109: #{tpu_custom_call.1} parent=107 // pred_check
          %p1334 = pneg %p103
        $region110: #{tpu_custom_call.1} parent=107 // pred_check_branch
          %1336 = sbr.rel (%p1334) target = $region112
        $region111: #{tpu_custom_call.1} parent=107 // pred_region
          %s1337 = sand.u32 %s88, 1
          %s1338 = sand.u32 %s88, 1
          %s1339 = smul.addr %s1338, 512
          %s1340 = scalar_lea.vmem [#allocation3], %s1339
        $region112: #{tpu_custom_call.1} parent=107 // pred_fallthru
          _
      $region108: #{tpu_custom_call.1} parent=5 // pred_fallthru
        _
    $region6: #{tpu_custom_call.1} parent=1 // loop_footer
      %s12 = sadd.s32 1, %s8
    $region7: #{tpu_custom_call.1} parent=1 // loop_footer_branch
      %7 = sbr.rel target = $region3
    $region8: #{tpu_custom_call.1} parent=1 // loop_exit
      _

</llo_original>
